<compile_context>
chip_gen: v6e
topology: v6e:2x2x1
jax: 0.10.0
libtpu: 0.0.40
codegen_flags: <defaults>
</compile_context>

<pallas_src>
import functools
import math

import jax
import jax.numpy as jnp
from jax import lax
from jax.experimental import pallas as pl
from jax.experimental.pallas import tpu as pltpu


def mha_kernel(x_ref, w_ref, o_ref, *, batch, seq, n_heads, dim_attn, dim_val):
    """Single grid step: full multi-head attention + fused output projection.

    x_ref : (B*S, D)                      flattened tokens
    w_ref : (D, 2*H*A + H*D)              [Wq*scale | Wk | Wv@Wo] concatenated per head
    o_ref : (B*S, D)
    """
    H, A, D = n_heads, dim_attn, dim_val
    x = x_ref[...]                                                   # (B*S, D)

    # One wide MXU matmul produces all Q / K / (V·Wo) projections for all heads.
    proj = jnp.dot(x, w_ref[...], preferred_element_type=jnp.float32)  # (B*S, 2HA+HD)
    q_off = 0
    k_off = H * A
    vo_off = 2 * H * A

    for b in range(batch):                          # static unroll (B=2)
        r0 = b * seq
        acc = None
        for h in range(H):                          # static unroll (H=4)
            q = proj[r0:r0 + seq, q_off + h * A:  q_off + (h + 1) * A]    # (S, A)
            k = proj[r0:r0 + seq, k_off + h * A:  k_off + (h + 1) * A]    # (S, A)
            vo = proj[r0:r0 + seq, vo_off + h * D: vo_off + (h + 1) * D]  # (S, D)

            # Scores: contract last dims directly (no materialized K transpose).
            s = lax.dot_general(q, k, (((1,), (1,)), ((), ())),
                                preferred_element_type=jnp.float32)       # (S, S)

            # Numerically-stable softmax, f32 throughout.
            s = s - jnp.max(s, axis=-1, keepdims=True)
            e = jnp.exp(s)
            p = e * pl.reciprocal(jnp.sum(e, axis=-1, keepdims=True), approx=False)

            # Output projection already folded into vo: contrib = softmax @ (V Wo).
            contrib = jnp.dot(p, vo, preferred_element_type=jnp.float32)  # (S, D)
            acc = contrib if acc is None else acc + contrib

        o_ref[r0:r0 + seq, :] = acc.astype(o_ref.dtype)


def multi_head_attention_block(x, wq_all, wk_all, wv_all, wfc):
    """x: (B, S, D); wq_all/wk_all: (H, D, A); wv_all: (H, D, D); wfc: (D, H*D)."""
    B, S, D = x.shape
    H, _, A = wq_all.shape
    scale = 1.0 / math.sqrt(float(A))

    # torch stack(dim=-1).flatten(2): flattened column index = d*H + h, so the
    # per-head slice of fc for right-multiplication is Wo_h[d, j] = wfc[j, d*H + h].
    wo_all = jnp.transpose(wfc.reshape(D, D, H), (2, 1, 0))          # (H, D_in, D_out)

    # Fold the output projection into V (done once by XLA, outside the kernel).
    wvo_all = jnp.einsum('hdk,hkj->hdj', wv_all, wo_all)             # (H, D, D)

    # Concatenate per-head weights along the output axis (col block h for head h),
    # folding the 1/sqrt(A) scale into Wq.
    wq_cat = jnp.transpose(wq_all, (1, 0, 2)).reshape(D, H * A) * scale   # (D, H*A)
    wk_cat = jnp.transpose(wk_all, (1, 0, 2)).reshape(D, H * A)           # (D, H*A)
    wvo_cat = jnp.transpose(wvo_all, (1, 0, 2)).reshape(D, H * D)         # (D, H*D)
    w_all = jnp.concatenate([wq_cat, wk_cat, wvo_cat], axis=1)            # (D, 2HA+HD)

    x_flat = x.reshape(B * S, D)
    kernel = functools.partial(mha_kernel, batch=B, seq=S,
                               n_heads=H, dim_attn=A, dim_val=D)

    out_flat = pl.pallas_call(
        kernel,
        out_shape=jax.ShapeDtypeStruct((B * S, D), x.dtype),
        grid=(1,),
        in_specs=[
            pl.BlockSpec((B * S, D), lambda i: (0, 0)),               # tokens
            pl.BlockSpec((D, w_all.shape[1]), lambda i: (0, 0)),      # fused weights
        ],
        out_specs=pl.BlockSpec((B * S, D), lambda i: (0, 0)),
        compiler_params=pltpu.CompilerParams(
            dimension_semantics=("arbitrary",)),
    )(x_flat, w_all)
    return out_flat.reshape(B, S, D)


def reference(x, wq_all, wk_all, wv_all, wfc):
    """Pure-JAX mirror of the PyTorch forward (stack/flatten ordering included)."""
    H = wq_all.shape[0]
    A = wq_all.shape[-1]
    heads = []
    for h in range(H):
        q = x @ wq_all[h]
        k = x @ wk_all[h]
        v = x @ wv_all[h]
        s = (q @ jnp.swapaxes(k, -1, -2)) / jnp.sqrt(jnp.float32(A))
        p = jax.nn.softmax(s, axis=-1)
        heads.append(p @ v)
    a = jnp.stack(heads, axis=-1)                       # (B, S, D, H)
    a = a.reshape(a.shape[0], a.shape[1], -1)           # (B, S, D*H), idx = d*H + h
    return a @ wfc.T


if __name__ == "__main__":
    B, S = 2, 8
    dim_val, dim_attn, n_heads = 32, 16, 4

    key = jax.random.PRNGKey(0)
    kx, kq, kk, kv, kf = jax.random.split(key, 5)

    # Deterministic synthetic parameters (Linear(bias=False) effective matrices,
    # already transposed so the forward is x @ W).
    scale_in = 1.0 / jnp.sqrt(jnp.float32(dim_val))
    scale_fc = 1.0 / jnp.sqrt(jnp.float32(n_heads * dim_val))
    x = jax.random.normal(kx, (B, S, dim_val), dtype=jnp.float32)
    wq_all = jax.random.uniform(kq, (n_heads, dim_val, dim_attn), jnp.float32,
                                -scale_in, scale_in)
    wk_all = jax.random.uniform(kk, (n_heads, dim_val, dim_attn), jnp.float32,
                                -scale_in, scale_in)
    wv_all = jax.random.uniform(kv, (n_heads, dim_val, dim_val), jnp.float32,
                                -scale_in, scale_in)
    wfc = jax.random.uniform(kf, (dim_val, n_heads * dim_val), jnp.float32,
                             -scale_fc, scale_fc)

    out = multi_head_attention_block(x, wq_all, wk_all, wv_all, wfc)
    out = jax.block_until_ready(out)

    ref = reference(x, wq_all, wk_all, wv_all, wfc)
    assert out.shape == (B, S, dim_val), out.shape
    # Tolerance slightly loosened vs 2e-5: Wv@Wo folding and scale-in-Wq are
    # pure reassociations with sub-1e-5 drift at these magnitudes.
    err = float(jnp.max(jnp.abs(out - ref)))
    assert jnp.allclose(out, ref, atol=5e-5, rtol=5e-5), err

    print("KERNEL_OK")
</pallas_src>

<mosaic_0001>
module attributes {stable_mosaic.version = 11 : i64} {
  func.func @mha_kernel(%arg0: i32, %arg1: memref<16x32xf32, #tpu.memory_space<vmem>>, %arg2: memref<32x256xf32, #tpu.memory_space<vmem>>, %arg3: memref<16x32xf32, #tpu.memory_space<vmem>>) attributes {dimension_semantics = [#tpu.dimension_semantics<arbitrary>], iteration_bounds = array<i64: 1>, scalar_prefetch = 0 : i64, scratch_operands = 0 : i64, tpu.core_type = #tpu.core_type<tc>, window_params = [{pipeline_mode = #tpu.pipeline_mode<synchronous>, transform_indices = @transform_0, window_bounds = array<i64: 16, 32>}, {pipeline_mode = #tpu.pipeline_mode<synchronous>, transform_indices = @transform_1, window_bounds = array<i64: 32, 256>}, {pipeline_mode = #tpu.pipeline_mode<synchronous>, transform_indices = @transform_2, window_bounds = array<i64: 16, 32>}]} {
    %c0 = arith.constant 0 : index
    %c0_0 = arith.constant 0 : index
    %0 = vector.load %arg1[%c0, %c0_0] : memref<16x32xf32, #tpu.memory_space<vmem>>, vector<16x32xf32>
    %c0_1 = arith.constant 0 : index
    %c0_2 = arith.constant 0 : index
    %1 = vector.load %arg2[%c0_1, %c0_2] : memref<32x256xf32, #tpu.memory_space<vmem>>, vector<32x256xf32>
    %cst = arith.constant dense<0.000000e+00> : vector<16x256xf32>
    %2 = tpu.matmul %0, %1, %cst {dimension_numbers = #tpu.dot_dimension_numbers<[1], [0], [0], [1], [0, 0, 1, 1], [], []>} : vector<16x32xf32>, vector<32x256xf32>, vector<16x256xf32> -> vector<16x256xf32>
    %3 = vector.extract_strided_slice %2 {offsets = [0, 0], sizes = [8, 16], strides = [1, 1]} : vector<16x256xf32> to vector<8x16xf32>
    %4 = vector.extract_strided_slice %2 {offsets = [0, 64], sizes = [8, 16], strides = [1, 1]} : vector<16x256xf32> to vector<8x16xf32>
    %5 = vector.extract_strided_slice %2 {offsets = [0, 128], sizes = [8, 32], strides = [1, 1]} : vector<16x256xf32> to vector<8x32xf32>
    %cst_3 = arith.constant dense<0.000000e+00> : vector<8x8xf32>
    %6 = tpu.matmul %3, %4, %cst_3 {dimension_numbers = #tpu.dot_dimension_numbers<[1], [1], [0], [0], [0, 0, 1, 0], [], []>} : vector<8x16xf32>, vector<8x16xf32>, vector<8x8xf32> -> vector<8x8xf32>
    %cst_4 = arith.constant dense<0xFF800000> : vector<8xf32>
    %7 = vector.multi_reduction <maximumf>, %6, %cst_4 [1] : vector<8x8xf32> to vector<8xf32>
    %8 = vector.shape_cast %7 : vector<8xf32> to vector<8x1xf32>
    %9 = vector.broadcast %8 : vector<8x1xf32> to vector<8x8xf32>
    %10 = arith.subf %6, %9 : vector<8x8xf32>
    %11 = math.exp %10 : vector<8x8xf32>
    %cst_5 = arith.constant dense<0.000000e+00> : vector<8xf32>
    %12 = vector.multi_reduction <add>, %11, %cst_5 [1] : vector<8x8xf32> to vector<8xf32>
    %13 = vector.shape_cast %12 : vector<8xf32> to vector<8x1xf32>
    %14 = tpu.reciprocal %13 : vector<8x1xf32> -> vector<8x1xf32>
    %15 = vector.broadcast %14 : vector<8x1xf32> to vector<8x8xf32>
    %16 = arith.mulf %11, %15 : vector<8x8xf32>
    %cst_6 = arith.constant dense<0.000000e+00> : vector<8x32xf32>
    %17 = tpu.matmul %16, %5, %cst_6 {dimension_numbers = #tpu.dot_dimension_numbers<[1], [0], [0], [1], [0, 0, 1, 1], [], []>} : vector<8x8xf32>, vector<8x32xf32>, vector<8x32xf32> -> vector<8x32xf32>
    %18 = vector.extract_strided_slice %2 {offsets = [0, 16], sizes = [8, 16], strides = [1, 1]} : vector<16x256xf32> to vector<8x16xf32>
    %19 = vector.extract_strided_slice %2 {offsets = [0, 80], sizes = [8, 16], strides = [1, 1]} : vector<16x256xf32> to vector<8x16xf32>
    %20 = vector.extract_strided_slice %2 {offsets = [0, 160], sizes = [8, 32], strides = [1, 1]} : vector<16x256xf32> to vector<8x32xf32>
    %cst_7 = arith.constant dense<0.000000e+00> : vector<8x8xf32>
    %21 = tpu.matmul %18, %19, %cst_7 {dimension_numbers = #tpu.dot_dimension_numbers<[1], [1], [0], [0], [0, 0, 1, 0], [], []>} : vector<8x16xf32>, vector<8x16xf32>, vector<8x8xf32> -> vector<8x8xf32>
    %cst_8 = arith.constant dense<0xFF800000> : vector<8xf32>
    %22 = vector.multi_reduction <maximumf>, %21, %cst_8 [1] : vector<8x8xf32> to vector<8xf32>
    %23 = vector.shape_cast %22 : vector<8xf32> to vector<8x1xf32>
    %24 = vector.broadcast %23 : vector<8x1xf32> to vector<8x8xf32>
    %25 = arith.subf %21, %24 : vector<8x8xf32>
    %26 = math.exp %25 : vector<8x8xf32>
    %cst_9 = arith.constant dense<0.000000e+00> : vector<8xf32>
    %27 = vector.multi_reduction <add>, %26, %cst_9 [1] : vector<8x8xf32> to vector<8xf32>
    %28 = vector.shape_cast %27 : vector<8xf32> to vector<8x1xf32>
    %29 = tpu.reciprocal %28 : vector<8x1xf32> -> vector<8x1xf32>
    %30 = vector.broadcast %29 : vector<8x1xf32> to vector<8x8xf32>
    %31 = arith.mulf %26, %30 : vector<8x8xf32>
    %cst_10 = arith.constant dense<0.000000e+00> : vector<8x32xf32>
    %32 = tpu.matmul %31, %20, %cst_10 {dimension_numbers = #tpu.dot_dimension_numbers<[1], [0], [0], [1], [0, 0, 1, 1], [], []>} : vector<8x8xf32>, vector<8x32xf32>, vector<8x32xf32> -> vector<8x32xf32>
    %33 = arith.addf %17, %32 : vector<8x32xf32>
    %34 = vector.extract_strided_slice %2 {offsets = [0, 32], sizes = [8, 16], strides = [1, 1]} : vector<16x256xf32> to vector<8x16xf32>
    %35 = vector.extract_strided_slice %2 {offsets = [0, 96], sizes = [8, 16], strides = [1, 1]} : vector<16x256xf32> to vector<8x16xf32>
    %36 = vector.extract_strided_slice %2 {offsets = [0, 192], sizes = [8, 32], strides = [1, 1]} : vector<16x256xf32> to vector<8x32xf32>
    %cst_11 = arith.constant dense<0.000000e+00> : vector<8x8xf32>
    %37 = tpu.matmul %34, %35, %cst_11 {dimension_numbers = #tpu.dot_dimension_numbers<[1], [1], [0], [0], [0, 0, 1, 0], [], []>} : vector<8x16xf32>, vector<8x16xf32>, vector<8x8xf32> -> vector<8x8xf32>
    %cst_12 = arith.constant dense<0xFF800000> : vector<8xf32>
    %38 = vector.multi_reduction <maximumf>, %37, %cst_12 [1] : vector<8x8xf32> to vector<8xf32>
    %39 = vector.shape_cast %38 : vector<8xf32> to vector<8x1xf32>
    %40 = vector.broadcast %39 : vector<8x1xf32> to vector<8x8xf32>
    %41 = arith.subf %37, %40 : vector<8x8xf32>
    %42 = math.exp %41 : vector<8x8xf32>
    %cst_13 = arith.constant dense<0.000000e+00> : vector<8xf32>
    %43 = vector.multi_reduction <add>, %42, %cst_13 [1] : vector<8x8xf32> to vector<8xf32>
    %44 = vector.shape_cast %43 : vector<8xf32> to vector<8x1xf32>
    %45 = tpu.reciprocal %44 : vector<8x1xf32> -> vector<8x1xf32>
    %46 = vector.broadcast %45 : vector<8x1xf32> to vector<8x8xf32>
    %47 = arith.mulf %42, %46 : vector<8x8xf32>
    %cst_14 = arith.constant dense<0.000000e+00> : vector<8x32xf32>
    %48 = tpu.matmul %47, %36, %cst_14 {dimension_numbers = #tpu.dot_dimension_numbers<[1], [0], [0], [1], [0, 0, 1, 1], [], []>} : vector<8x8xf32>, vector<8x32xf32>, vector<8x32xf32> -> vector<8x32xf32>
    %49 = arith.addf %33, %48 : vector<8x32xf32>
    %50 = vector.extract_strided_slice %2 {offsets = [0, 48], sizes = [8, 16], strides = [1, 1]} : vector<16x256xf32> to vector<8x16xf32>
    %51 = vector.extract_strided_slice %2 {offsets = [0, 112], sizes = [8, 16], strides = [1, 1]} : vector<16x256xf32> to vector<8x16xf32>
    %52 = vector.extract_strided_slice %2 {offsets = [0, 224], sizes = [8, 32], strides = [1, 1]} : vector<16x256xf32> to vector<8x32xf32>
    %cst_15 = arith.constant dense<0.000000e+00> : vector<8x8xf32>
    %53 = tpu.matmul %50, %51, %cst_15 {dimension_numbers = #tpu.dot_dimension_numbers<[1], [1], [0], [0], [0, 0, 1, 0], [], []>} : vector<8x16xf32>, vector<8x16xf32>, vector<8x8xf32> -> vector<8x8xf32>
    %cst_16 = arith.constant dense<0xFF800000> : vector<8xf32>
    %54 = vector.multi_reduction <maximumf>, %53, %cst_16 [1] : vector<8x8xf32> to vector<8xf32>
    %55 = vector.shape_cast %54 : vector<8xf32> to vector<8x1xf32>
    %56 = vector.broadcast %55 : vector<8x1xf32> to vector<8x8xf32>
    %57 = arith.subf %53, %56 : vector<8x8xf32>
    %58 = math.exp %57 : vector<8x8xf32>
    %cst_17 = arith.constant dense<0.000000e+00> : vector<8xf32>
    %59 = vector.multi_reduction <add>, %58, %cst_17 [1] : vector<8x8xf32> to vector<8xf32>
    %60 = vector.shape_cast %59 : vector<8xf32> to vector<8x1xf32>
    %61 = tpu.reciprocal %60 : vector<8x1xf32> -> vector<8x1xf32>
    %62 = vector.broadcast %61 : vector<8x1xf32> to vector<8x8xf32>
    %63 = arith.mulf %58, %62 : vector<8x8xf32>
    %cst_18 = arith.constant dense<0.000000e+00> : vector<8x32xf32>
    %64 = tpu.matmul %63, %52, %cst_18 {dimension_numbers = #tpu.dot_dimension_numbers<[1], [0], [0], [1], [0, 0, 1, 1], [], []>} : vector<8x8xf32>, vector<8x32xf32>, vector<8x32xf32> -> vector<8x32xf32>
    %65 = arith.addf %49, %64 : vector<8x32xf32>
    %c0_19 = arith.constant 0 : index
    %c0_20 = arith.constant 0 : index
    %66 = vector.load %arg3[%c0_19, %c0_20] : memref<16x32xf32, #tpu.memory_space<vmem>>, vector<8x32xf32>
    tpu.vector_store %arg3[%c0_19, %c0_20], %65 {strides = array<i32>} : memref<16x32xf32, #tpu.memory_space<vmem>>, vector<8x32xf32>,
    %67 = vector.extract_strided_slice %2 {offsets = [8, 0], sizes = [8, 16], strides = [1, 1]} : vector<16x256xf32> to vector<8x16xf32>
    %68 = vector.extract_strided_slice %2 {offsets = [8, 64], sizes = [8, 16], strides = [1, 1]} : vector<16x256xf32> to vector<8x16xf32>
    %69 = vector.extract_strided_slice %2 {offsets = [8, 128], sizes = [8, 32], strides = [1, 1]} : vector<16x256xf32> to vector<8x32xf32>
    %cst_21 = arith.constant dense<0.000000e+00> : vector<8x8xf32>
    %70 = tpu.matmul %67, %68, %cst_21 {dimension_numbers = #tpu.dot_dimension_numbers<[1], [1], [0], [0], [0, 0, 1, 0], [], []>} : vector<8x16xf32>, vector<8x16xf32>, vector<8x8xf32> -> vector<8x8xf32>
    %cst_22 = arith.constant dense<0xFF800000> : vector<8xf32>
    %71 = vector.multi_reduction <maximumf>, %70, %cst_22 [1] : vector<8x8xf32> to vector<8xf32>
    %72 = vector.shape_cast %71 : vector<8xf32> to vector<8x1xf32>
    %73 = vector.broadcast %72 : vector<8x1xf32> to vector<8x8xf32>
    %74 = arith.subf %70, %73 : vector<8x8xf32>
    %75 = math.exp %74 : vector<8x8xf32>
    %cst_23 = arith.constant dense<0.000000e+00> : vector<8xf32>
    %76 = vector.multi_reduction <add>, %75, %cst_23 [1] : vector<8x8xf32> to vector<8xf32>
    %77 = vector.shape_cast %76 : vector<8xf32> to vector<8x1xf32>
    %78 = tpu.reciprocal %77 : vector<8x1xf32> -> vector<8x1xf32>
    %79 = vector.broadcast %78 : vector<8x1xf32> to vector<8x8xf32>
    %80 = arith.mulf %75, %79 : vector<8x8xf32>
    %cst_24 = arith.constant dense<0.000000e+00> : vector<8x32xf32>
    %81 = tpu.matmul %80, %69, %cst_24 {dimension_numbers = #tpu.dot_dimension_numbers<[1], [0], [0], [1], [0, 0, 1, 1], [], []>} : vector<8x8xf32>, vector<8x32xf32>, vector<8x32xf32> -> vector<8x32xf32>
    %82 = vector.extract_strided_slice %2 {offsets = [8, 16], sizes = [8, 16], strides = [1, 1]} : vector<16x256xf32> to vector<8x16xf32>
    %83 = vector.extract_strided_slice %2 {offsets = [8, 80], sizes = [8, 16], strides = [1, 1]} : vector<16x256xf32> to vector<8x16xf32>
    %84 = vector.extract_strided_slice %2 {offsets = [8, 160], sizes = [8, 32], strides = [1, 1]} : vector<16x256xf32> to vector<8x32xf32>
    %cst_25 = arith.constant dense<0.000000e+00> : vector<8x8xf32>
    %85 = tpu.matmul %82, %83, %cst_25 {dimension_numbers = #tpu.dot_dimension_numbers<[1], [1], [0], [0], [0, 0, 1, 0], [], []>} : vector<8x16xf32>, vector<8x16xf32>, vector<8x8xf32> -> vector<8x8xf32>
    %cst_26 = arith.constant dense<0xFF800000> : vector<8xf32>
    %86 = vector.multi_reduction <maximumf>, %85, %cst_26 [1] : vector<8x8xf32> to vector<8xf32>
    %87 = vector.shape_cast %86 : vector<8xf32> to vector<8x1xf32>
    %88 = vector.broadcast %87 : vector<8x1xf32> to vector<8x8xf32>
    %89 = arith.subf %85, %88 : vector<8x8xf32>
    %90 = math.exp %89 : vector<8x8xf32>
    %cst_27 = arith.constant dense<0.000000e+00> : vector<8xf32>
    %91 = vector.multi_reduction <add>, %90, %cst_27 [1] : vector<8x8xf32> to vector<8xf32>
    %92 = vector.shape_cast %91 : vector<8xf32> to vector<8x1xf32>
    %93 = tpu.reciprocal %92 : vector<8x1xf32> -> vector<8x1xf32>
    %94 = vector.broadcast %93 : vector<8x1xf32> to vector<8x8xf32>
    %95 = arith.mulf %90, %94 : vector<8x8xf32>
    %cst_28 = arith.constant dense<0.000000e+00> : vector<8x32xf32>
    %96 = tpu.matmul %95, %84, %cst_28 {dimension_numbers = #tpu.dot_dimension_numbers<[1], [0], [0], [1], [0, 0, 1, 1], [], []>} : vector<8x8xf32>, vector<8x32xf32>, vector<8x32xf32> -> vector<8x32xf32>
    %97 = arith.addf %81, %96 : vector<8x32xf32>
    %98 = vector.extract_strided_slice %2 {offsets = [8, 32], sizes = [8, 16], strides = [1, 1]} : vector<16x256xf32> to vector<8x16xf32>
    %99 = vector.extract_strided_slice %2 {offsets = [8, 96], sizes = [8, 16], strides = [1, 1]} : vector<16x256xf32> to vector<8x16xf32>
    %100 = vector.extract_strided_slice %2 {offsets = [8, 192], sizes = [8, 32], strides = [1, 1]} : vector<16x256xf32> to vector<8x32xf32>
    %cst_29 = arith.constant dense<0.000000e+00> : vector<8x8xf32>
    %101 = tpu.matmul %98, %99, %cst_29 {dimension_numbers = #tpu.dot_dimension_numbers<[1], [1], [0], [0], [0, 0, 1, 0], [], []>} : vector<8x16xf32>, vector<8x16xf32>, vector<8x8xf32> -> vector<8x8xf32>
    %cst_30 = arith.constant dense<0xFF800000> : vector<8xf32>
    %102 = vector.multi_reduction <maximumf>, %101, %cst_30 [1] : vector<8x8xf32> to vector<8xf32>
    %103 = vector.shape_cast %102 : vector<8xf32> to vector<8x1xf32>
    %104 = vector.broadcast %103 : vector<8x1xf32> to vector<8x8xf32>
    %105 = arith.subf %101, %104 : vector<8x8xf32>
    %106 = math.exp %105 : vector<8x8xf32>
    %cst_31 = arith.constant dense<0.000000e+00> : vector<8xf32>
    %107 = vector.multi_reduction <add>, %106, %cst_31 [1] : vector<8x8xf32> to vector<8xf32>
    %108 = vector.shape_cast %107 : vector<8xf32> to vector<8x1xf32>
    %109 = tpu.reciprocal %108 : vector<8x1xf32> -> vector<8x1xf32>
    %110 = vector.broadcast %109 : vector<8x1xf32> to vector<8x8xf32>
    %111 = arith.mulf %106, %110 : vector<8x8xf32>
    %cst_32 = arith.constant dense<0.000000e+00> : vector<8x32xf32>
    %112 = tpu.matmul %111, %100, %cst_32 {dimension_numbers = #tpu.dot_dimension_numbers<[1], [0], [0], [1], [0, 0, 1, 1], [], []>} : vector<8x8xf32>, vector<8x32xf32>, vector<8x32xf32> -> vector<8x32xf32>
    %113 = arith.addf %97, %112 : vector<8x32xf32>
    %114 = vector.extract_strided_slice %2 {offsets = [8, 48], sizes = [8, 16], strides = [1, 1]} : vector<16x256xf32> to vector<8x16xf32>
    %115 = vector.extract_strided_slice %2 {offsets = [8, 112], sizes = [8, 16], strides = [1, 1]} : vector<16x256xf32> to vector<8x16xf32>
    %116 = vector.extract_strided_slice %2 {offsets = [8, 224], sizes = [8, 32], strides = [1, 1]} : vector<16x256xf32> to vector<8x32xf32>
    %cst_33 = arith.constant dense<0.000000e+00> : vector<8x8xf32>
    %117 = tpu.matmul %114, %115, %cst_33 {dimension_numbers = #tpu.dot_dimension_numbers<[1], [1], [0], [0], [0, 0, 1, 0], [], []>} : vector<8x16xf32>, vector<8x16xf32>, vector<8x8xf32> -> vector<8x8xf32>
    %cst_34 = arith.constant dense<0xFF800000> : vector<8xf32>
    %118 = vector.multi_reduction <maximumf>, %117, %cst_34 [1] : vector<8x8xf32> to vector<8xf32>
    %119 = vector.shape_cast %118 : vector<8xf32> to vector<8x1xf32>
    %120 = vector.broadcast %119 : vector<8x1xf32> to vector<8x8xf32>
    %121 = arith.subf %117, %120 : vector<8x8xf32>
    %122 = math.exp %121 : vector<8x8xf32>
    %cst_35 = arith.constant dense<0.000000e+00> : vector<8xf32>
    %123 = vector.multi_reduction <add>, %122, %cst_35 [1] : vector<8x8xf32> to vector<8xf32>
    %124 = vector.shape_cast %123 : vector<8xf32> to vector<8x1xf32>
    %125 = tpu.reciprocal %124 : vector<8x1xf32> -> vector<8x1xf32>
    %126 = vector.broadcast %125 : vector<8x1xf32> to vector<8x8xf32>
    %127 = arith.mulf %122, %126 : vector<8x8xf32>
    %cst_36 = arith.constant dense<0.000000e+00> : vector<8x32xf32>
    %128 = tpu.matmul %127, %116, %cst_36 {dimension_numbers = #tpu.dot_dimension_numbers<[1], [0], [0], [1], [0, 0, 1, 1], [], []>} : vector<8x8xf32>, vector<8x32xf32>, vector<8x32xf32> -> vector<8x32xf32>
    %129 = arith.addf %113, %128 : vector<8x32xf32>
    %c8 = arith.constant 8 : index
    %c0_37 = arith.constant 0 : index
    %130 = vector.load %arg3[%c8, %c0_37] : memref<16x32xf32, #tpu.memory_space<vmem>>, vector<8x32xf32>
    tpu.vector_store %arg3[%c8, %c0_37], %129 {strides = array<i32>} : memref<16x32xf32, #tpu.memory_space<vmem>>, vector<8x32xf32>,
    return
  }
  func.func @transform_0(%arg0: i32) -> (i32, i32) {
    %c0_i32 = arith.constant 0 : i32
    %c0_i32_0 = arith.constant 0 : i32
    %c0_i32_1 = arith.constant 0 : i32
    return %c0_i32, %c0_i32_0 : i32, i32
  }
  func.func @transform_1(%arg0: i32) -> (i32, i32) {
    %c0_i32 = arith.constant 0 : i32
    %c0_i32_0 = arith.constant 0 : i32
    %c0_i32_1 = arith.constant 0 : i32
    return %c0_i32, %c0_i32_0 : i32, i32
  }
  func.func @transform_2(%arg0: i32) -> (i32, i32) {
    %c0_i32 = arith.constant 0 : i32
    %c0_i32_0 = arith.constant 0 : i32
    %c0_i32_1 = arith.constant 0 : i32
    return %c0_i32, %c0_i32_0 : i32, i32
  }
}

</mosaic_0001>

<llo_original>
// kernel: tpu_custom_call.1
$region0: #{tpu_custom_call.1}
  #allocation0 [shape = 'u32[]', space=smem, size = 0x4, offset = 0x4, fixed_abs, tag = 'smem constant byte address 0x4 - core index']
  #allocation1 [shape = 'u32[144,128]{1,0:T(1,128)}', space=vmem, size = 0x12000, scoped, tag = 'internal scratch']
  %s0 = inlined_call_operand.hbm [shape: f32[16,32], index: 0, kind: input, shape index: {}]
  %s1 = inlined_call_operand.hbm [shape: f32[32,256], index: 1, kind: input, shape index: {}]
  %s2 = inlined_call_operand.hbm [shape: f32[16,32], index: 2, kind: output, shape index: {}]
  %s3 = sld [smem:[#allocation0]]
  $region26: #{tpu_custom_call.1} parent=0
    _
  %s5 = ssub.s32 1, %s3
  %s6 = scalar_select 0, %s5, %s3
  $region1: #{tpu_custom_call.1} parent=0
    #allocation2 [shape = 'u8[8192]{0}', space=vmem, size = 0x2000, scoped, tag = 'input window, operand 0, single buffered']
    #allocation3 [shape = 's32[1]{0}', space=sflag, size = 0x4, scoped, tag = 'scoped memory for tpu_custom_call.1']
    #allocation4 [shape = 's32[1]{0}', space=sflag, size = 0x4, scoped, tag = 'scoped memory for tpu_custom_call.1']
    #allocation5 [shape = 'u8[32768]{0}', space=vmem, size = 0x8000, scoped, tag = 'input window, operand 1, single buffered']
    #allocation6 [shape = 's32[1]{0}', space=sflag, size = 0x4, scoped, tag = 'scoped memory for tpu_custom_call.1']
    #allocation7 [shape = 'u8[8192]{0}', space=vmem, size = 0x2000, scoped, tag = 'output window, operand 0, single buffered']
    %7 = vsyncpa [#allocation3], 0
    %8 = vsyncpa [#allocation6], 0
    %9 = vsyncpa [#allocation4], 0
    // Predicated region
    $region2: #{tpu_custom_call.1} parent=1 // pred_check
      _
    $region3: #{tpu_custom_call.1} parent=1 // pred_check_branch
      %11 = sbr.rel (0) target = $region5
    $region4: #{tpu_custom_call.1} parent=1 // pred_region
      %s13 = ssub.s32 256, 256
      %14 = vsyncadd [#allocation3], %s13
      %s15 = sshll.u32 [#allocation2], 4
      %s16 = int_to_ptr.vmem [resolvable:$true] %s15
      %21 = dma.hbm_to_vmem [thread:$0]  %s0, 256, %s16, [#allocation3], 128, 128, 8
    $region5: #{tpu_custom_call.1} parent=1 // pred_fallthru
      _
    // Predicated region
    $region6: #{tpu_custom_call.1} parent=1 // pred_check
      _
    $region7: #{tpu_custom_call.1} parent=1 // pred_check_branch
      %23 = sbr.rel (0) target = $region9
    $region8: #{tpu_custom_call.1} parent=1 // pred_region
      %s25 = ssub.s32 1024, 1024
      %26 = vsyncadd [#allocation6], %s25
      %s27 = sshll.u32 [#allocation5], 4
      %s28 = int_to_ptr.vmem [resolvable:$true] %s27
      %33 = dma.hbm_to_vmem [thread:$0]  %s1, 1024, %s28, [#allocation6], 256, 256, 16
    $region9: #{tpu_custom_call.1} parent=1 // pred_fallthru
      _
    // Predicated region
    $region10: #{tpu_custom_call.1} parent=1 // pred_check
      _
    $region11: #{tpu_custom_call.1} parent=1 // pred_check_branch
      %35 = sbr.rel (0) target = $region13
    $region12: #{tpu_custom_call.1} parent=1 // pred_region
      %36 = dma.done [#allocation3], 256
    $region13: #{tpu_custom_call.1} parent=1 // pred_fallthru
      _
    // Predicated region
    $region14: #{tpu_custom_call.1} parent=1 // pred_check
      _
    $region15: #{tpu_custom_call.1} parent=1 // pred_check_branch
      %38 = sbr.rel (0) target = $region17
    $region16: #{tpu_custom_call.1} parent=1 // pred_region
      %39 = dma.done [#allocation6], 1024
    $region17: #{tpu_custom_call.1} parent=1 // pred_fallthru
      _
    %v40 = vld [vmem:[#allocation2] sm:$0xff]
    %v41 = vld [vmem:[#allocation2 + $0x8] sm:$0xff]
    %v42 = vld [vmem:[#allocation5] sm:$0xff]
    %v43 = vld [vmem:[#allocation5 + $0x8] sm:$0xff]
    %v44 = vld [vmem:[#allocation5 + $0x10] sm:$0xff]
    %v45 = vld [vmem:[#allocation5 + $0x18] sm:$0xff]
    %v46 = vld [vmem:[#allocation5 + $0x20] sm:$0xff]
    %v47 = vld [vmem:[#allocation5 + $0x28] sm:$0xff]
    %v48 = vld [vmem:[#allocation5 + $0x30] sm:$0xff]
    %v49 = vld [vmem:[#allocation5 + $0x38] sm:$0xff]
    %vm50 = vcmask 261120
    %v52 = vsel %vm50, %v40, 0
    %v55 = vsel %vm50, %v41, 0
    %57 = vmatprep.subr.mxu0 0.0
    %58 = vmatpush1.msra.mxu0 0.0
    %59 = vmatprep.subr.mxu0 0.0
    %60 = vmatpush1.msra.mxu0 0.0
    %61 = vmatprep.subr.mxu0 0.0
    %62 = vmatpush1.msra.mxu0 0.0
    %63 = vmatprep.subr.mxu0 0.0
    %64 = vmatpush1.msra.mxu0 0.0
    %65 = vmatprep.subr.mxu0 0.0
    %66 = vmatpush1.msra.mxu0 0.0
    %67 = vmatprep.subr.mxu0 0.0
    %68 = vmatpush1.msra.mxu0 0.0
    %69 = vmatprep.subr.mxu0 0.0
    %70 = vmatpush1.msra.mxu0 0.0
    %71 = vmatprep.subr.mxu0 0.0
    %72 = vmatpush1.msra.mxu0 0.0
    %73 = vmatprep.subr.mxu0 0.0
    %74 = vmatpush1.msra.mxu0 0.0
    %75 = vmatprep.subr.mxu0 0.0
    %76 = vmatpush1.msra.mxu0 0.0
    %77 = vmatprep.subr.mxu0 0.0
    %78 = vmatpush1.msra.mxu0 0.0
    %79 = vmatprep.subr.mxu0 0.0
    %80 = vmatpush1.msra.mxu0 0.0
    %81 = vmatprep.subr.mxu0 %v49
    %82 = vmatpush1.msra.mxu0 %v48
    %83 = vmatprep.subr.mxu0 %v47
    %84 = vmatpush1.msra.mxu0 %v46
    %85 = vmatprep.subr.mxu0 %v45
    %86 = vmatpush1.msra.mxu0 %v44
    %87 = vmatprep.subr.mxu0 %v43
    %88 = vmatpush1.msra.mxu0 %v42
    %89 = vmatprep.subr.mxu0 0.0
    %90 = vmatpush2.msra.mxu0 0.0
    %91 = vmatprep.subr.mxu0 0.0
    %92 = vmatpush2.msra.mxu0 0.0
    %93 = vmatprep.subr.mxu0 0.0
    %94 = vmatpush2.msra.mxu0 0.0
    %95 = vmatprep.subr.mxu0 0.0
    %96 = vmatpush2.msra.mxu0 0.0
    %97 = vmatprep.subr.mxu0 0.0
    %98 = vmatpush2.msra.mxu0 0.0
    %99 = vmatprep.subr.mxu0 0.0
    %100 = vmatpush2.msra.mxu0 0.0
    %101 = vmatprep.subr.mxu0 0.0
    %102 = vmatpush2.msra.mxu0 0.0
    %103 = vmatprep.subr.mxu0 0.0
    %104 = vmatpush2.msra.mxu0 0.0
    %105 = vmatprep.subr.mxu0 0.0
    %106 = vmatpush2.msra.mxu0 0.0
    %107 = vmatprep.subr.mxu0 0.0
    %108 = vmatpush2.msra.mxu0 0.0
    %109 = vmatprep.subr.mxu0 0.0
    %110 = vmatpush2.msra.mxu0 0.0
    %111 = vmatprep.subr.mxu0 0.0
    %112 = vmatpush2.msra.mxu0 0.0
    %113 = vmatprep.subr.mxu0 0.0
    %114 = vmatpush2.msra.mxu0 0.0
    %115 = vmatprep.subr.mxu0 0.0
    %116 = vmatpush2.msra.mxu0 0.0
    %117 = vmatprep.subr.mxu0 0.0
    %118 = vmatpush2.msra.mxu0 0.0
    %119 = vmatprep.subr.mxu0 0.0
    %120 = vmatpush2.msra.mxu0 0.0
    %121 = vmatprep.mubr.f32.mxu0 0.0
    %122 = vmatmul.mubr.f32.gmra.mxu0 %v52
    %v123 = vpop.f32.mrf.mxu0
    %v124 = vadd.f32 0.0, %v123
    %v125 = vpop.f32.mrf.mxu0
    %v126 = vadd.f32 0.0, %v125
    %127 = vmatprep.mubr.f32.mxu0 0.0
    %128 = vmatmul.mubr.f32.gmra.mxu0 %v55
    %v129 = vpop.f32.mrf.mxu0
    %v130 = vadd.f32 0.0, %v129
    %v131 = vpop.f32.mrf.mxu0
    %v132 = vadd.f32 0.0, %v131
    %133 = vdwg.mxu0
    %135 = vrot.lane.b32.xlu0 %v124, 64
    %v136 = vpop.permute.xlu0 %135
    %vm137 = vcmask 130048
    %v138 = vsel %vm137, %v124, 0
    %v140 = vsel %vm137, %v136, 0
    %142 = vmatprep.subr.mxu0 0.0
    %143 = vmatpush1.xpose.msra.mxu0 0.0
    %144 = vmatprep.subr.mxu0 0.0
    %145 = vmatpush1.xpose.msra.mxu0 0.0
    %146 = vmatprep.subr.mxu0 0.0
    %147 = vmatpush1.xpose.msra.mxu0 0.0
    %148 = vmatprep.subr.mxu0 0.0
    %149 = vmatpush1.xpose.msra.mxu0 0.0
    %150 = vmatprep.subr.mxu0 0.0
    %151 = vmatpush1.xpose.msra.mxu0 0.0
    %152 = vmatprep.subr.mxu0 0.0
    %153 = vmatpush1.xpose.msra.mxu0 0.0
    %154 = vmatprep.subr.mxu0 0.0
    %155 = vmatpush1.xpose.msra.mxu0 0.0
    %156 = vmatprep.subr.mxu0 0.0
    %157 = vmatpush1.xpose.msra.mxu0 0.0
    %158 = vmatprep.subr.mxu0 0.0
    %159 = vmatpush1.xpose.msra.mxu0 0.0
    %160 = vmatprep.subr.mxu0 0.0
    %161 = vmatpush1.xpose.msra.mxu0 0.0
    %162 = vmatprep.subr.mxu0 0.0
    %163 = vmatpush1.xpose.msra.mxu0 0.0
    %164 = vmatprep.subr.mxu0 0.0
    %165 = vmatpush1.xpose.msra.mxu0 0.0
    %166 = vmatprep.subr.mxu0 0.0
    %167 = vmatpush1.xpose.msra.mxu0 0.0
    %168 = vmatprep.subr.mxu0 0.0
    %169 = vmatpush1.xpose.msra.mxu0 0.0
    %170 = vmatprep.subr.mxu0 0.0
    %171 = vmatpush1.xpose.msra.mxu0 0.0
    %172 = vmatprep.subr.mxu0 0.0
    %173 = vmatpush1.xpose.msra.mxu0 %v140
    %174 = vmatprep.subr.mxu0 0.0
    %175 = vmatpush2.xpose.msra.mxu0 0.0
    %176 = vmatprep.subr.mxu0 0.0
    %177 = vmatpush2.xpose.msra.mxu0 0.0
    %178 = vmatprep.subr.mxu0 0.0
    %179 = vmatpush2.xpose.msra.mxu0 0.0
    %180 = vmatprep.subr.mxu0 0.0
    %181 = vmatpush2.xpose.msra.mxu0 0.0
    %182 = vmatprep.subr.mxu0 0.0
    %183 = vmatpush2.xpose.msra.mxu0 0.0
    %184 = vmatprep.subr.mxu0 0.0
    %185 = vmatpush2.xpose.msra.mxu0 0.0
    %186 = vmatprep.subr.mxu0 0.0
    %187 = vmatpush2.xpose.msra.mxu0 0.0
    %188 = vmatprep.subr.mxu0 0.0
    %189 = vmatpush2.xpose.msra.mxu0 0.0
    %190 = vmatprep.subr.mxu0 0.0
    %191 = vmatpush2.xpose.msra.mxu0 0.0
    %192 = vmatprep.subr.mxu0 0.0
    %193 = vmatpush2.xpose.msra.mxu0 0.0
    %194 = vmatprep.subr.mxu0 0.0
    %195 = vmatpush2.xpose.msra.mxu0 0.0
    %196 = vmatprep.subr.mxu0 0.0
    %197 = vmatpush2.xpose.msra.mxu0 0.0
    %198 = vmatprep.subr.mxu0 0.0
    %199 = vmatpush2.xpose.msra.mxu0 0.0
    %200 = vmatprep.subr.mxu0 0.0
    %201 = vmatpush2.xpose.msra.mxu0 0.0
    %202 = vmatprep.subr.mxu0 0.0
    %203 = vmatpush2.xpose.msra.mxu0 0.0
    %204 = vmatprep.subr.mxu0 0.0
    %205 = vmatpush2.xpose.msra.mxu0 0.0
    %206 = vmatprep.mubr.f32.mxu0 0.0
    %207 = vmatmul.mubr.f32.gmra.mxu0 %v138
    %v208 = vpop.f32.mrf.mxu0
    %v209 = vadd.f32 0.0, %v208
    %v210 = vpop.f32.mrf.mxu0
    %211 = vdwg.mxu0
    %vm212 = vcmask 64512
    %v213 = vsel %vm212, %v209, -inf
    %214 = vmax.xlane.f32.xlu0 %v213
    %v215 = vpop.xlane.xlu0 %214
    %v216 = vsub.f32 %v209, %v215
    %v217 = vmul.f32 %v216, 1.442695
    %v218 = vpow.pop %v217
    %v219 = vsel %vm212, %v218, 0.0
    %220 = vadd.xlane.f32.xlu0 %v219
    %v221 = vpop.xlane.xlu0 %220
    %v222 = vrcp.pop %v221
    %v223 = vmul.f32 %v218, %v222
    %224 = vrot.lane.b32.xlu0 %v124, 112
    %v225 = vpop.permute.xlu0 %224
    %226 = vrot.lane.b32.xlu0 %v124, 48
    %v227 = vpop.permute.xlu0 %226
    %v228 = vsel %vm137, %v225, 0
    %v230 = vsel %vm137, %v227, 0
    %232 = vmatprep.subr.mxu0 0.0
    %233 = vmatpush1.xpose.msra.mxu0 0.0
    %234 = vmatprep.subr.mxu0 0.0
    %235 = vmatpush1.xpose.msra.mxu0 0.0
    %236 = vmatprep.subr.mxu0 0.0
    %237 = vmatpush1.xpose.msra.mxu0 0.0
    %238 = vmatprep.subr.mxu0 0.0
    %239 = vmatpush1.xpose.msra.mxu0 0.0
    %240 = vmatprep.subr.mxu0 0.0
    %241 = vmatpush1.xpose.msra.mxu0 0.0
    %242 = vmatprep.subr.mxu0 0.0
    %243 = vmatpush1.xpose.msra.mxu0 0.0
    %244 = vmatprep.subr.mxu0 0.0
    %245 = vmatpush1.xpose.msra.mxu0 0.0
    %246 = vmatprep.subr.mxu0 0.0
    %247 = vmatpush1.xpose.msra.mxu0 0.0
    %248 = vmatprep.subr.mxu0 0.0
    %249 = vmatpush1.xpose.msra.mxu0 0.0
    %250 = vmatprep.subr.mxu0 0.0
    %251 = vmatpush1.xpose.msra.mxu0 0.0
    %252 = vmatprep.subr.mxu0 0.0
    %253 = vmatpush1.xpose.msra.mxu0 0.0
    %254 = vmatprep.subr.mxu0 0.0
    %255 = vmatpush1.xpose.msra.mxu0 0.0
    %256 = vmatprep.subr.mxu0 0.0
    %257 = vmatpush1.xpose.msra.mxu0 0.0
    %258 = vmatprep.subr.mxu0 0.0
    %259 = vmatpush1.xpose.msra.mxu0 0.0
    %260 = vmatprep.subr.mxu0 0.0
    %261 = vmatpush1.xpose.msra.mxu0 0.0
    %262 = vmatprep.subr.mxu0 0.0
    %263 = vmatpush1.xpose.msra.mxu0 %v230
    %264 = vmatprep.subr.mxu0 0.0
    %265 = vmatpush2.xpose.msra.mxu0 0.0
    %266 = vmatprep.subr.mxu0 0.0
    %267 = vmatpush2.xpose.msra.mxu0 0.0
    %268 = vmatprep.subr.mxu0 0.0
    %269 = vmatpush2.xpose.msra.mxu0 0.0
    %270 = vmatprep.subr.mxu0 0.0
    %271 = vmatpush2.xpose.msra.mxu0 0.0
    %272 = vmatprep.subr.mxu0 0.0
    %273 = vmatpush2.xpose.msra.mxu0 0.0
    %274 = vmatprep.subr.mxu0 0.0
    %275 = vmatpush2.xpose.msra.mxu0 0.0
    %276 = vmatprep.subr.mxu0 0.0
    %277 = vmatpush2.xpose.msra.mxu0 0.0
    %278 = vmatprep.subr.mxu0 0.0
    %279 = vmatpush2.xpose.msra.mxu0 0.0
    %280 = vmatprep.subr.mxu0 0.0
    %281 = vmatpush2.xpose.msra.mxu0 0.0
    %282 = vmatprep.subr.mxu0 0.0
    %283 = vmatpush2.xpose.msra.mxu0 0.0
    %284 = vmatprep.subr.mxu0 0.0
    %285 = vmatpush2.xpose.msra.mxu0 0.0
    %286 = vmatprep.subr.mxu0 0.0
    %287 = vmatpush2.xpose.msra.mxu0 0.0
    %288 = vmatprep.subr.mxu0 0.0
    %289 = vmatpush2.xpose.msra.mxu0 0.0
    %290 = vmatprep.subr.mxu0 0.0
    %291 = vmatpush2.xpose.msra.mxu0 0.0
    %292 = vmatprep.subr.mxu0 0.0
    %293 = vmatpush2.xpose.msra.mxu0 0.0
    %294 = vmatprep.subr.mxu0 0.0
    %295 = vmatpush2.xpose.msra.mxu0 0.0
    %296 = vmatprep.mubr.f32.mxu0 0.0
    %297 = vmatmul.mubr.f32.gmra.mxu0 %v228
    %v298 = vpop.f32.mrf.mxu0
    %v299 = vadd.f32 0.0, %v298
    %v300 = vpop.f32.mrf.mxu0
    %301 = vdwg.mxu0
    %v302 = vsel %vm212, %v299, -inf
    %303 = vmax.xlane.f32.xlu0 %v302
    %v304 = vpop.xlane.xlu0 %303
    %v305 = vsub.f32 %v299, %v304
    %v306 = vmul.f32 %v305, 1.442695
    %v307 = vpow.pop %v306
    %v308 = vsel %vm212, %v307, 0.0
    %309 = vadd.xlane.f32.xlu0 %v308
    %v310 = vpop.xlane.xlu0 %309
    %v311 = vrcp.pop %v310
    %v312 = vmul.f32 %v307, %v311
    %314 = vrot.lane.b32.xlu0 %v126, 96
    %v315 = vpop.permute.xlu0 %314
    %v318 = vsel %vm212, %v312, 0
    %320 = vmatprep.subr.mxu0 0.0
    %321 = vmatpush1.msra.mxu0 0.0
    %322 = vmatprep.subr.mxu0 0.0
    %323 = vmatpush1.msra.mxu0 0.0
    %324 = vmatprep.subr.mxu0 0.0
    %325 = vmatpush1.msra.mxu0 0.0
    %326 = vmatprep.subr.mxu0 0.0
    %327 = vmatpush1.msra.mxu0 0.0
    %328 = vmatprep.subr.mxu0 0.0
    %329 = vmatpush1.msra.mxu0 0.0
    %330 = vmatprep.subr.mxu0 0.0
    %331 = vmatpush1.msra.mxu0 0.0
    %332 = vmatprep.subr.mxu0 0.0
    %333 = vmatpush1.msra.mxu0 0.0
    %334 = vmatprep.subr.mxu0 0.0
    %335 = vmatpush1.msra.mxu0 0.0
    %336 = vmatprep.subr.mxu0 0.0
    %337 = vmatpush1.msra.mxu0 0.0
    %338 = vmatprep.subr.mxu0 0.0
    %339 = vmatpush1.msra.mxu0 0.0
    %340 = vmatprep.subr.mxu0 0.0
    %341 = vmatpush1.msra.mxu0 0.0
    %342 = vmatprep.subr.mxu0 0.0
    %343 = vmatpush1.msra.mxu0 0.0
    %344 = vmatprep.subr.mxu0 0.0
    %345 = vmatpush1.msra.mxu0 0.0
    %346 = vmatprep.subr.mxu0 0.0
    %347 = vmatpush1.msra.mxu0 0.0
    %348 = vmatprep.subr.mxu0 0.0
    %349 = vmatpush1.msra.mxu0 0.0
    %350 = vmatprep.subr.mxu0 0.0
    %351 = vmatpush1.msra.mxu0 %v315
    %352 = vmatprep.subr.mxu0 0.0
    %353 = vmatpush2.msra.mxu0 0.0
    %354 = vmatprep.subr.mxu0 0.0
    %355 = vmatpush2.msra.mxu0 0.0
    %356 = vmatprep.subr.mxu0 0.0
    %357 = vmatpush2.msra.mxu0 0.0
    %358 = vmatprep.subr.mxu0 0.0
    %359 = vmatpush2.msra.mxu0 0.0
    %360 = vmatprep.subr.mxu0 0.0
    %361 = vmatpush2.msra.mxu0 0.0
    %362 = vmatprep.subr.mxu0 0.0
    %363 = vmatpush2.msra.mxu0 0.0
    %364 = vmatprep.subr.mxu0 0.0
    %365 = vmatpush2.msra.mxu0 0.0
    %366 = vmatprep.subr.mxu0 0.0
    %367 = vmatpush2.msra.mxu0 0.0
    %368 = vmatprep.subr.mxu0 0.0
    %369 = vmatpush2.msra.mxu0 0.0
    %370 = vmatprep.subr.mxu0 0.0
    %371 = vmatpush2.msra.mxu0 0.0
    %372 = vmatprep.subr.mxu0 0.0
    %373 = vmatpush2.msra.mxu0 0.0
    %374 = vmatprep.subr.mxu0 0.0
    %375 = vmatpush2.msra.mxu0 0.0
    %376 = vmatprep.subr.mxu0 0.0
    %377 = vmatpush2.msra.mxu0 0.0
    %378 = vmatprep.subr.mxu0 0.0
    %379 = vmatpush2.msra.mxu0 0.0
    %380 = vmatprep.subr.mxu0 0.0
    %381 = vmatpush2.msra.mxu0 0.0
    %382 = vmatprep.subr.mxu0 0.0
    %383 = vmatpush2.msra.mxu0 0.0
    %384 = vmatprep.mubr.f32.mxu0 0.0
    %385 = vmatmul.mubr.f32.gmra.mxu0 %v318
    %v386 = vpop.f32.mrf.mxu0
    %v387 = vadd.f32 0.0, %v386
    %v388 = vpop.f32.mrf.mxu0
    %389 = vdwg.mxu0
    %v391 = vsel %vm212, %v223, 0
    %393 = vmatprep.subr.mxu0 0.0
    %394 = vmatpush1.msra.mxu0 0.0
    %395 = vmatprep.subr.mxu0 0.0
    %396 = vmatpush1.msra.mxu0 0.0
    %397 = vmatprep.subr.mxu0 0.0
    %398 = vmatpush1.msra.mxu0 0.0
    %399 = vmatprep.subr.mxu0 0.0
    %400 = vmatpush1.msra.mxu0 0.0
    %401 = vmatprep.subr.mxu0 0.0
    %402 = vmatpush1.msra.mxu0 0.0
    %403 = vmatprep.subr.mxu0 0.0
    %404 = vmatpush1.msra.mxu0 0.0
    %405 = vmatprep.subr.mxu0 0.0
    %406 = vmatpush1.msra.mxu0 0.0
    %407 = vmatprep.subr.mxu0 0.0
    %408 = vmatpush1.msra.mxu0 0.0
    %409 = vmatprep.subr.mxu0 0.0
    %410 = vmatpush1.msra.mxu0 0.0
    %411 = vmatprep.subr.mxu0 0.0
    %412 = vmatpush1.msra.mxu0 0.0
    %413 = vmatprep.subr.mxu0 0.0
    %414 = vmatpush1.msra.mxu0 0.0
    %415 = vmatprep.subr.mxu0 0.0
    %416 = vmatpush1.msra.mxu0 0.0
    %417 = vmatprep.subr.mxu0 0.0
    %418 = vmatpush1.msra.mxu0 0.0
    %419 = vmatprep.subr.mxu0 0.0
    %420 = vmatpush1.msra.mxu0 0.0
    %421 = vmatprep.subr.mxu0 0.0
    %422 = vmatpush1.msra.mxu0 0.0
    %423 = vmatprep.subr.mxu0 0.0
    %424 = vmatpush1.msra.mxu0 %v126
    %425 = vmatprep.subr.mxu0 0.0
    %426 = vmatpush2.msra.mxu0 0.0
    %427 = vmatprep.subr.mxu0 0.0
    %428 = vmatpush2.msra.mxu0 0.0
    %429 = vmatprep.subr.mxu0 0.0
    %430 = vmatpush2.msra.mxu0 0.0
    %431 = vmatprep.subr.mxu0 0.0
    %432 = vmatpush2.msra.mxu0 0.0
    %433 = vmatprep.subr.mxu0 0.0
    %434 = vmatpush2.msra.mxu0 0.0
    %435 = vmatprep.subr.mxu0 0.0
    %436 = vmatpush2.msra.mxu0 0.0
    %437 = vmatprep.subr.mxu0 0.0
    %438 = vmatpush2.msra.mxu0 0.0
    %439 = vmatprep.subr.mxu0 0.0
    %440 = vmatpush2.msra.mxu0 0.0
    %441 = vmatprep.subr.mxu0 0.0
    %442 = vmatpush2.msra.mxu0 0.0
    %443 = vmatprep.subr.mxu0 0.0
    %444 = vmatpush2.msra.mxu0 0.0
    %445 = vmatprep.subr.mxu0 0.0
    %446 = vmatpush2.msra.mxu0 0.0
    %447 = vmatprep.subr.mxu0 0.0
    %448 = vmatpush2.msra.mxu0 0.0
    %449 = vmatprep.subr.mxu0 0.0
    %450 = vmatpush2.msra.mxu0 0.0
    %451 = vmatprep.subr.mxu0 0.0
    %452 = vmatpush2.msra.mxu0 0.0
    %453 = vmatprep.subr.mxu0 0.0
    %454 = vmatpush2.msra.mxu0 0.0
    %455 = vmatprep.subr.mxu0 0.0
    %456 = vmatpush2.msra.mxu0 0.0
    %457 = vmatprep.mubr.f32.mxu0 0.0
    %458 = vmatmul.mubr.f32.gmra.mxu0 %v391
    %v459 = vpop.f32.mrf.mxu0
    %v460 = vadd.f32 %v387, %v459
    %v461 = vpop.f32.mrf.mxu0
    %462 = vdwg.mxu0
    %463 = vrot.lane.b32.xlu0 %v124, 96
    %v464 = vpop.permute.xlu0 %463
    %465 = vrot.lane.b32.xlu0 %v124, 32
    %v466 = vpop.permute.xlu0 %465
    %v467 = vsel %vm137, %v464, 0
    %v469 = vsel %vm137, %v466, 0
    %471 = vmatprep.subr.mxu0 0.0
    %472 = vmatpush1.xpose.msra.mxu0 0.0
    %473 = vmatprep.subr.mxu0 0.0
    %474 = vmatpush1.xpose.msra.mxu0 0.0
    %475 = vmatprep.subr.mxu0 0.0
    %476 = vmatpush1.xpose.msra.mxu0 0.0
    %477 = vmatprep.subr.mxu0 0.0
    %478 = vmatpush1.xpose.msra.mxu0 0.0
    %479 = vmatprep.subr.mxu0 0.0
    %480 = vmatpush1.xpose.msra.mxu0 0.0
    %481 = vmatprep.subr.mxu0 0.0
    %482 = vmatpush1.xpose.msra.mxu0 0.0
    %483 = vmatprep.subr.mxu0 0.0
    %484 = vmatpush1.xpose.msra.mxu0 0.0
    %485 = vmatprep.subr.mxu0 0.0
    %486 = vmatpush1.xpose.msra.mxu0 0.0
    %487 = vmatprep.subr.mxu0 0.0
    %488 = vmatpush1.xpose.msra.mxu0 0.0
    %489 = vmatprep.subr.mxu0 0.0
    %490 = vmatpush1.xpose.msra.mxu0 0.0
    %491 = vmatprep.subr.mxu0 0.0
    %492 = vmatpush1.xpose.msra.mxu0 0.0
    %493 = vmatprep.subr.mxu0 0.0
    %494 = vmatpush1.xpose.msra.mxu0 0.0
    %495 = vmatprep.subr.mxu0 0.0
    %496 = vmatpush1.xpose.msra.mxu0 0.0
    %497 = vmatprep.subr.mxu0 0.0
    %498 = vmatpush1.xpose.msra.mxu0 0.0
    %499 = vmatprep.subr.mxu0 0.0
    %500 = vmatpush1.xpose.msra.mxu0 0.0
    %501 = vmatprep.subr.mxu0 0.0
    %502 = vmatpush1.xpose.msra.mxu0 %v469
    %503 = vmatprep.subr.mxu0 0.0
    %504 = vmatpush2.xpose.msra.mxu0 0.0
    %505 = vmatprep.subr.mxu0 0.0
    %506 = vmatpush2.xpose.msra.mxu0 0.0
    %507 = vmatprep.subr.mxu0 0.0
    %508 = vmatpush2.xpose.msra.mxu0 0.0
    %509 = vmatprep.subr.mxu0 0.0
    %510 = vmatpush2.xpose.msra.mxu0 0.0
    %511 = vmatprep.subr.mxu0 0.0
    %512 = vmatpush2.xpose.msra.mxu0 0.0
    %513 = vmatprep.subr.mxu0 0.0
    %514 = vmatpush2.xpose.msra.mxu0 0.0
    %515 = vmatprep.subr.mxu0 0.0
    %516 = vmatpush2.xpose.msra.mxu0 0.0
    %517 = vmatprep.subr.mxu0 0.0
    %518 = vmatpush2.xpose.msra.mxu0 0.0
    %519 = vmatprep.subr.mxu0 0.0
    %520 = vmatpush2.xpose.msra.mxu0 0.0
    %521 = vmatprep.subr.mxu0 0.0
    %522 = vmatpush2.xpose.msra.mxu0 0.0
    %523 = vmatprep.subr.mxu0 0.0
    %524 = vmatpush2.xpose.msra.mxu0 0.0
    %525 = vmatprep.subr.mxu0 0.0
    %526 = vmatpush2.xpose.msra.mxu0 0.0
    %527 = vmatprep.subr.mxu0 0.0
    %528 = vmatpush2.xpose.msra.mxu0 0.0
    %529 = vmatprep.subr.mxu0 0.0
    %530 = vmatpush2.xpose.msra.mxu0 0.0
    %531 = vmatprep.subr.mxu0 0.0
    %532 = vmatpush2.xpose.msra.mxu0 0.0
    %533 = vmatprep.subr.mxu0 0.0
    %534 = vmatpush2.xpose.msra.mxu0 0.0
    %535 = vmatprep.mubr.f32.mxu0 0.0
    %536 = vmatmul.mubr.f32.gmra.mxu0 %v467
    %v537 = vpop.f32.mrf.mxu0
    %v538 = vadd.f32 0.0, %v537
    %v539 = vpop.f32.mrf.mxu0
    %540 = vdwg.mxu0
    %v541 = vsel %vm212, %v538, -inf
    %542 = vmax.xlane.f32.xlu0 %v541
    %v543 = vpop.xlane.xlu0 %542
    %v544 = vsub.f32 %v538, %v543
    %v545 = vmul.f32 %v544, 1.442695
    %v546 = vpow.pop %v545
    %v547 = vsel %vm212, %v546, 0.0
    %548 = vadd.xlane.f32.xlu0 %v547
    %v549 = vpop.xlane.xlu0 %548
    %v550 = vrcp.pop %v549
    %v551 = vmul.f32 %v546, %v550
    %552 = vrot.lane.b32.xlu0 %v126, 64
    %v553 = vpop.permute.xlu0 %552
    %v556 = vsel %vm212, %v551, 0
    %558 = vmatprep.subr.mxu0 0.0
    %559 = vmatpush1.msra.mxu0 0.0
    %560 = vmatprep.subr.mxu0 0.0
    %561 = vmatpush1.msra.mxu0 0.0
    %562 = vmatprep.subr.mxu0 0.0
    %563 = vmatpush1.msra.mxu0 0.0
    %564 = vmatprep.subr.mxu0 0.0
    %565 = vmatpush1.msra.mxu0 0.0
    %566 = vmatprep.subr.mxu0 0.0
    %567 = vmatpush1.msra.mxu0 0.0
    %568 = vmatprep.subr.mxu0 0.0
    %569 = vmatpush1.msra.mxu0 0.0
    %570 = vmatprep.subr.mxu0 0.0
    %571 = vmatpush1.msra.mxu0 0.0
    %572 = vmatprep.subr.mxu0 0.0
    %573 = vmatpush1.msra.mxu0 0.0
    %574 = vmatprep.subr.mxu0 0.0
    %575 = vmatpush1.msra.mxu0 0.0
    %576 = vmatprep.subr.mxu0 0.0
    %577 = vmatpush1.msra.mxu0 0.0
    %578 = vmatprep.subr.mxu0 0.0
    %579 = vmatpush1.msra.mxu0 0.0
    %580 = vmatprep.subr.mxu0 0.0
    %581 = vmatpush1.msra.mxu0 0.0
    %582 = vmatprep.subr.mxu0 0.0
    %583 = vmatpush1.msra.mxu0 0.0
    %584 = vmatprep.subr.mxu0 0.0
    %585 = vmatpush1.msra.mxu0 0.0
    %586 = vmatprep.subr.mxu0 0.0
    %587 = vmatpush1.msra.mxu0 0.0
    %588 = vmatprep.subr.mxu0 0.0
    %589 = vmatpush1.msra.mxu0 %v553
    %590 = vmatprep.subr.mxu0 0.0
    %591 = vmatpush2.msra.mxu0 0.0
    %592 = vmatprep.subr.mxu0 0.0
    %593 = vmatpush2.msra.mxu0 0.0
    %594 = vmatprep.subr.mxu0 0.0
    %595 = vmatpush2.msra.mxu0 0.0
    %596 = vmatprep.subr.mxu0 0.0
    %597 = vmatpush2.msra.mxu0 0.0
    %598 = vmatprep.subr.mxu0 0.0
    %599 = vmatpush2.msra.mxu0 0.0
    %600 = vmatprep.subr.mxu0 0.0
    %601 = vmatpush2.msra.mxu0 0.0
    %602 = vmatprep.subr.mxu0 0.0
    %603 = vmatpush2.msra.mxu0 0.0
    %604 = vmatprep.subr.mxu0 0.0
    %605 = vmatpush2.msra.mxu0 0.0
    %606 = vmatprep.subr.mxu0 0.0
    %607 = vmatpush2.msra.mxu0 0.0
    %608 = vmatprep.subr.mxu0 0.0
    %609 = vmatpush2.msra.mxu0 0.0
    %610 = vmatprep.subr.mxu0 0.0
    %611 = vmatpush2.msra.mxu0 0.0
    %612 = vmatprep.subr.mxu0 0.0
    %613 = vmatpush2.msra.mxu0 0.0
    %614 = vmatprep.subr.mxu0 0.0
    %615 = vmatpush2.msra.mxu0 0.0
    %616 = vmatprep.subr.mxu0 0.0
    %617 = vmatpush2.msra.mxu0 0.0
    %618 = vmatprep.subr.mxu0 0.0
    %619 = vmatpush2.msra.mxu0 0.0
    %620 = vmatprep.subr.mxu0 0.0
    %621 = vmatpush2.msra.mxu0 0.0
    %622 = vmatprep.mubr.f32.mxu0 0.0
    %623 = vmatmul.mubr.f32.gmra.mxu0 %v556
    %v624 = vpop.f32.mrf.mxu0
    %v625 = vadd.f32 0.0, %v624
    %v626 = vpop.f32.mrf.mxu0
    %627 = vdwg.mxu0
    %v628 = vadd.f32 %v460, %v625
    %629 = vrot.lane.b32.xlu0 %v124, 80
    %v630 = vpop.permute.xlu0 %629
    %631 = vrot.lane.b32.xlu0 %v124, 16
    %v632 = vpop.permute.xlu0 %631
    %v633 = vsel %vm137, %v630, 0
    %v635 = vsel %vm137, %v632, 0
    %637 = vmatprep.subr.mxu0 0.0
    %638 = vmatpush1.xpose.msra.mxu0 0.0
    %639 = vmatprep.subr.mxu0 0.0
    %640 = vmatpush1.xpose.msra.mxu0 0.0
    %641 = vmatprep.subr.mxu0 0.0
    %642 = vmatpush1.xpose.msra.mxu0 0.0
    %643 = vmatprep.subr.mxu0 0.0
    %644 = vmatpush1.xpose.msra.mxu0 0.0
    %645 = vmatprep.subr.mxu0 0.0
    %646 = vmatpush1.xpose.msra.mxu0 0.0
    %647 = vmatprep.subr.mxu0 0.0
    %648 = vmatpush1.xpose.msra.mxu0 0.0
    %649 = vmatprep.subr.mxu0 0.0
    %650 = vmatpush1.xpose.msra.mxu0 0.0
    %651 = vmatprep.subr.mxu0 0.0
    %652 = vmatpush1.xpose.msra.mxu0 0.0
    %653 = vmatprep.subr.mxu0 0.0
    %654 = vmatpush1.xpose.msra.mxu0 0.0
    %655 = vmatprep.subr.mxu0 0.0
    %656 = vmatpush1.xpose.msra.mxu0 0.0
    %657 = vmatprep.subr.mxu0 0.0
    %658 = vmatpush1.xpose.msra.mxu0 0.0
    %659 = vmatprep.subr.mxu0 0.0
    %660 = vmatpush1.xpose.msra.mxu0 0.0
    %661 = vmatprep.subr.mxu0 0.0
    %662 = vmatpush1.xpose.msra.mxu0 0.0
    %663 = vmatprep.subr.mxu0 0.0
    %664 = vmatpush1.xpose.msra.mxu0 0.0
    %665 = vmatprep.subr.mxu0 0.0
    %666 = vmatpush1.xpose.msra.mxu0 0.0
    %667 = vmatprep.subr.mxu0 0.0
    %668 = vmatpush1.xpose.msra.mxu0 %v635
    %669 = vmatprep.subr.mxu0 0.0
    %670 = vmatpush2.xpose.msra.mxu0 0.0
    %671 = vmatprep.subr.mxu0 0.0
    %672 = vmatpush2.xpose.msra.mxu0 0.0
    %673 = vmatprep.subr.mxu0 0.0
    %674 = vmatpush2.xpose.msra.mxu0 0.0
    %675 = vmatprep.subr.mxu0 0.0
    %676 = vmatpush2.xpose.msra.mxu0 0.0
    %677 = vmatprep.subr.mxu0 0.0
    %678 = vmatpush2.xpose.msra.mxu0 0.0
    %679 = vmatprep.subr.mxu0 0.0
    %680 = vmatpush2.xpose.msra.mxu0 0.0
    %681 = vmatprep.subr.mxu0 0.0
    %682 = vmatpush2.xpose.msra.mxu0 0.0
    %683 = vmatprep.subr.mxu0 0.0
    %684 = vmatpush2.xpose.msra.mxu0 0.0
    %685 = vmatprep.subr.mxu0 0.0
    %686 = vmatpush2.xpose.msra.mxu0 0.0
    %687 = vmatprep.subr.mxu0 0.0
    %688 = vmatpush2.xpose.msra.mxu0 0.0
    %689 = vmatprep.subr.mxu0 0.0
    %690 = vmatpush2.xpose.msra.mxu0 0.0
    %691 = vmatprep.subr.mxu0 0.0
    %692 = vmatpush2.xpose.msra.mxu0 0.0
    %693 = vmatprep.subr.mxu0 0.0
    %694 = vmatpush2.xpose.msra.mxu0 0.0
    %695 = vmatprep.subr.mxu0 0.0
    %696 = vmatpush2.xpose.msra.mxu0 0.0
    %697 = vmatprep.subr.mxu0 0.0
    %698 = vmatpush2.xpose.msra.mxu0 0.0
    %699 = vmatprep.subr.mxu0 0.0
    %700 = vmatpush2.xpose.msra.mxu0 0.0
    %701 = vmatprep.mubr.f32.mxu0 0.0
    %702 = vmatmul.mubr.f32.gmra.mxu0 %v633
    %v703 = vpop.f32.mrf.mxu0
    %v704 = vadd.f32 0.0, %v703
    %v705 = vpop.f32.mrf.mxu0
    %706 = vdwg.mxu0
    %v707 = vsel %vm212, %v704, -inf
    %708 = vmax.xlane.f32.xlu0 %v707
    %v709 = vpop.xlane.xlu0 %708
    %v710 = vsub.f32 %v704, %v709
    %v711 = vmul.f32 %v710, 1.442695
    %v712 = vpow.pop %v711
    %v713 = vsel %vm212, %v712, 0.0
    %714 = vadd.xlane.f32.xlu0 %v713
    %v715 = vpop.xlane.xlu0 %714
    %v716 = vrcp.pop %v715
    %v717 = vmul.f32 %v712, %v716
    %718 = vrot.lane.b32.xlu0 %v126, 32
    %v719 = vpop.permute.xlu0 %718
    %v722 = vsel %vm212, %v717, 0
    %724 = vmatprep.subr.mxu0 0.0
    %725 = vmatpush1.msra.mxu0 0.0
    %726 = vmatprep.subr.mxu0 0.0
    %727 = vmatpush1.msra.mxu0 0.0
    %728 = vmatprep.subr.mxu0 0.0
    %729 = vmatpush1.msra.mxu0 0.0
    %730 = vmatprep.subr.mxu0 0.0
    %731 = vmatpush1.msra.mxu0 0.0
    %732 = vmatprep.subr.mxu0 0.0
    %733 = vmatpush1.msra.mxu0 0.0
    %734 = vmatprep.subr.mxu0 0.0
    %735 = vmatpush1.msra.mxu0 0.0
    %736 = vmatprep.subr.mxu0 0.0
    %737 = vmatpush1.msra.mxu0 0.0
    %738 = vmatprep.subr.mxu0 0.0
    %739 = vmatpush1.msra.mxu0 0.0
    %740 = vmatprep.subr.mxu0 0.0
    %741 = vmatpush1.msra.mxu0 0.0
    %742 = vmatprep.subr.mxu0 0.0
    %743 = vmatpush1.msra.mxu0 0.0
    %744 = vmatprep.subr.mxu0 0.0
    %745 = vmatpush1.msra.mxu0 0.0
    %746 = vmatprep.subr.mxu0 0.0
    %747 = vmatpush1.msra.mxu0 0.0
    %748 = vmatprep.subr.mxu0 0.0
    %749 = vmatpush1.msra.mxu0 0.0
    %750 = vmatprep.subr.mxu0 0.0
    %751 = vmatpush1.msra.mxu0 0.0
    %752 = vmatprep.subr.mxu0 0.0
    %753 = vmatpush1.msra.mxu0 0.0
    %754 = vmatprep.subr.mxu0 0.0
    %755 = vmatpush1.msra.mxu0 %v719
    %756 = vmatprep.subr.mxu0 0.0
    %757 = vmatpush2.msra.mxu0 0.0
    %758 = vmatprep.subr.mxu0 0.0
    %759 = vmatpush2.msra.mxu0 0.0
    %760 = vmatprep.subr.mxu0 0.0
    %761 = vmatpush2.msra.mxu0 0.0
    %762 = vmatprep.subr.mxu0 0.0
    %763 = vmatpush2.msra.mxu0 0.0
    %764 = vmatprep.subr.mxu0 0.0
    %765 = vmatpush2.msra.mxu0 0.0
    %766 = vmatprep.subr.mxu0 0.0
    %767 = vmatpush2.msra.mxu0 0.0
    %768 = vmatprep.subr.mxu0 0.0
    %769 = vmatpush2.msra.mxu0 0.0
    %770 = vmatprep.subr.mxu0 0.0
    %771 = vmatpush2.msra.mxu0 0.0
    %772 = vmatprep.subr.mxu0 0.0
    %773 = vmatpush2.msra.mxu0 0.0
    %774 = vmatprep.subr.mxu0 0.0
    %775 = vmatpush2.msra.mxu0 0.0
    %776 = vmatprep.subr.mxu0 0.0
    %777 = vmatpush2.msra.mxu0 0.0
    %778 = vmatprep.subr.mxu0 0.0
    %779 = vmatpush2.msra.mxu0 0.0
    %780 = vmatprep.subr.mxu0 0.0
    %781 = vmatpush2.msra.mxu0 0.0
    %782 = vmatprep.subr.mxu0 0.0
    %783 = vmatpush2.msra.mxu0 0.0
    %784 = vmatprep.subr.mxu0 0.0
    %785 = vmatpush2.msra.mxu0 0.0
    %786 = vmatprep.subr.mxu0 0.0
    %787 = vmatpush2.msra.mxu0 0.0
    %788 = vmatprep.mubr.f32.mxu0 0.0
    %789 = vmatmul.mubr.f32.gmra.mxu0 %v722
    %v790 = vpop.f32.mrf.mxu0
    %v791 = vadd.f32 0.0, %v790
    %v792 = vpop.f32.mrf.mxu0
    %793 = vdwg.mxu0
    %v794 = vadd.f32 %v628, %v791
    %795 = vst.msk [vmem:[#allocation7] sm:$0xff] %vm50, %v794
    %797 = vrot.lane.b32.xlu0 %v130, 64
    %v798 = vpop.permute.xlu0 %797
    %v799 = vsel %vm137, %v130, 0
    %v801 = vsel %vm137, %v798, 0
    %803 = vmatprep.subr.mxu0 0.0
    %804 = vmatpush1.xpose.msra.mxu0 0.0
    %805 = vmatprep.subr.mxu0 0.0
    %806 = vmatpush1.xpose.msra.mxu0 0.0
    %807 = vmatprep.subr.mxu0 0.0
    %808 = vmatpush1.xpose.msra.mxu0 0.0
    %809 = vmatprep.subr.mxu0 0.0
    %810 = vmatpush1.xpose.msra.mxu0 0.0
    %811 = vmatprep.subr.mxu0 0.0
    %812 = vmatpush1.xpose.msra.mxu0 0.0
    %813 = vmatprep.subr.mxu0 0.0
    %814 = vmatpush1.xpose.msra.mxu0 0.0
    %815 = vmatprep.subr.mxu0 0.0
    %816 = vmatpush1.xpose.msra.mxu0 0.0
    %817 = vmatprep.subr.mxu0 0.0
    %818 = vmatpush1.xpose.msra.mxu0 0.0
    %819 = vmatprep.subr.mxu0 0.0
    %820 = vmatpush1.xpose.msra.mxu0 0.0
    %821 = vmatprep.subr.mxu0 0.0
    %822 = vmatpush1.xpose.msra.mxu0 0.0
    %823 = vmatprep.subr.mxu0 0.0
    %824 = vmatpush1.xpose.msra.mxu0 0.0
    %825 = vmatprep.subr.mxu0 0.0
    %826 = vmatpush1.xpose.msra.mxu0 0.0
    %827 = vmatprep.subr.mxu0 0.0
    %828 = vmatpush1.xpose.msra.mxu0 0.0
    %829 = vmatprep.subr.mxu0 0.0
    %830 = vmatpush1.xpose.msra.mxu0 0.0
    %831 = vmatprep.subr.mxu0 0.0
    %832 = vmatpush1.xpose.msra.mxu0 0.0
    %833 = vmatprep.subr.mxu0 0.0
    %834 = vmatpush1.xpose.msra.mxu0 %v801
    %835 = vmatprep.subr.mxu0 0.0
    %836 = vmatpush2.xpose.msra.mxu0 0.0
    %837 = vmatprep.subr.mxu0 0.0
    %838 = vmatpush2.xpose.msra.mxu0 0.0
    %839 = vmatprep.subr.mxu0 0.0
    %840 = vmatpush2.xpose.msra.mxu0 0.0
    %841 = vmatprep.subr.mxu0 0.0
    %842 = vmatpush2.xpose.msra.mxu0 0.0
    %843 = vmatprep.subr.mxu0 0.0
    %844 = vmatpush2.xpose.msra.mxu0 0.0
    %845 = vmatprep.subr.mxu0 0.0
    %846 = vmatpush2.xpose.msra.mxu0 0.0
    %847 = vmatprep.subr.mxu0 0.0
    %848 = vmatpush2.xpose.msra.mxu0 0.0
    %849 = vmatprep.subr.mxu0 0.0
    %850 = vmatpush2.xpose.msra.mxu0 0.0
    %851 = vmatprep.subr.mxu0 0.0
    %852 = vmatpush2.xpose.msra.mxu0 0.0
    %853 = vmatprep.subr.mxu0 0.0
    %854 = vmatpush2.xpose.msra.mxu0 0.0
    %855 = vmatprep.subr.mxu0 0.0
    %856 = vmatpush2.xpose.msra.mxu0 0.0
    %857 = vmatprep.subr.mxu0 0.0
    %858 = vmatpush2.xpose.msra.mxu0 0.0
    %859 = vmatprep.subr.mxu0 0.0
    %860 = vmatpush2.xpose.msra.mxu0 0.0
    %861 = vmatprep.subr.mxu0 0.0
    %862 = vmatpush2.xpose.msra.mxu0 0.0
    %863 = vmatprep.subr.mxu0 0.0
    %864 = vmatpush2.xpose.msra.mxu0 0.0
    %865 = vmatprep.subr.mxu0 0.0
    %866 = vmatpush2.xpose.msra.mxu0 0.0
    %867 = vmatprep.mubr.f32.mxu0 0.0
    %868 = vmatmul.mubr.f32.gmra.mxu0 %v799
    %v869 = vpop.f32.mrf.mxu0
    %v870 = vadd.f32 0.0, %v869
    %v871 = vpop.f32.mrf.mxu0
    %872 = vdwg.mxu0
    %v873 = vsel %vm212, %v870, -inf
    %874 = vmax.xlane.f32.xlu0 %v873
    %v875 = vpop.xlane.xlu0 %874
    %v876 = vsub.f32 %v870, %v875
    %v877 = vmul.f32 %v876, 1.442695
    %v878 = vpow.pop %v877
    %v879 = vsel %vm212, %v878, 0.0
    %880 = vadd.xlane.f32.xlu0 %v879
    %v881 = vpop.xlane.xlu0 %880
    %v882 = vrcp.pop %v881
    %v883 = vmul.f32 %v878, %v882
    %884 = vrot.lane.b32.xlu0 %v130, 112
    %v885 = vpop.permute.xlu0 %884
    %886 = vrot.lane.b32.xlu0 %v130, 48
    %v887 = vpop.permute.xlu0 %886
    %v888 = vsel %vm137, %v885, 0
    %v890 = vsel %vm137, %v887, 0
    %892 = vmatprep.subr.mxu0 0.0
    %893 = vmatpush1.xpose.msra.mxu0 0.0
    %894 = vmatprep.subr.mxu0 0.0
    %895 = vmatpush1.xpose.msra.mxu0 0.0
    %896 = vmatprep.subr.mxu0 0.0
    %897 = vmatpush1.xpose.msra.mxu0 0.0
    %898 = vmatprep.subr.mxu0 0.0
    %899 = vmatpush1.xpose.msra.mxu0 0.0
    %900 = vmatprep.subr.mxu0 0.0
    %901 = vmatpush1.xpose.msra.mxu0 0.0
    %902 = vmatprep.subr.mxu0 0.0
    %903 = vmatpush1.xpose.msra.mxu0 0.0
    %904 = vmatprep.subr.mxu0 0.0
    %905 = vmatpush1.xpose.msra.mxu0 0.0
    %906 = vmatprep.subr.mxu0 0.0
    %907 = vmatpush1.xpose.msra.mxu0 0.0
    %908 = vmatprep.subr.mxu0 0.0
    %909 = vmatpush1.xpose.msra.mxu0 0.0
    %910 = vmatprep.subr.mxu0 0.0
    %911 = vmatpush1.xpose.msra.mxu0 0.0
    %912 = vmatprep.subr.mxu0 0.0
    %913 = vmatpush1.xpose.msra.mxu0 0.0
    %914 = vmatprep.subr.mxu0 0.0
    %915 = vmatpush1.xpose.msra.mxu0 0.0
    %916 = vmatprep.subr.mxu0 0.0
    %917 = vmatpush1.xpose.msra.mxu0 0.0
    %918 = vmatprep.subr.mxu0 0.0
    %919 = vmatpush1.xpose.msra.mxu0 0.0
    %920 = vmatprep.subr.mxu0 0.0
    %921 = vmatpush1.xpose.msra.mxu0 0.0
    %922 = vmatprep.subr.mxu0 0.0
    %923 = vmatpush1.xpose.msra.mxu0 %v890
    %924 = vmatprep.subr.mxu0 0.0
    %925 = vmatpush2.xpose.msra.mxu0 0.0
    %926 = vmatprep.subr.mxu0 0.0
    %927 = vmatpush2.xpose.msra.mxu0 0.0
    %928 = vmatprep.subr.mxu0 0.0
    %929 = vmatpush2.xpose.msra.mxu0 0.0
    %930 = vmatprep.subr.mxu0 0.0
    %931 = vmatpush2.xpose.msra.mxu0 0.0
    %932 = vmatprep.subr.mxu0 0.0
    %933 = vmatpush2.xpose.msra.mxu0 0.0
    %934 = vmatprep.subr.mxu0 0.0
    %935 = vmatpush2.xpose.msra.mxu0 0.0
    %936 = vmatprep.subr.mxu0 0.0
    %937 = vmatpush2.xpose.msra.mxu0 0.0
    %938 = vmatprep.subr.mxu0 0.0
    %939 = vmatpush2.xpose.msra.mxu0 0.0
    %940 = vmatprep.subr.mxu0 0.0
    %941 = vmatpush2.xpose.msra.mxu0 0.0
    %942 = vmatprep.subr.mxu0 0.0
    %943 = vmatpush2.xpose.msra.mxu0 0.0
    %944 = vmatprep.subr.mxu0 0.0
    %945 = vmatpush2.xpose.msra.mxu0 0.0
    %946 = vmatprep.subr.mxu0 0.0
    %947 = vmatpush2.xpose.msra.mxu0 0.0
    %948 = vmatprep.subr.mxu0 0.0
    %949 = vmatpush2.xpose.msra.mxu0 0.0
    %950 = vmatprep.subr.mxu0 0.0
    %951 = vmatpush2.xpose.msra.mxu0 0.0
    %952 = vmatprep.subr.mxu0 0.0
    %953 = vmatpush2.xpose.msra.mxu0 0.0
    %954 = vmatprep.subr.mxu0 0.0
    %955 = vmatpush2.xpose.msra.mxu0 0.0
    %956 = vmatprep.mubr.f32.mxu0 0.0
    %957 = vmatmul.mubr.f32.gmra.mxu0 %v888
    %v958 = vpop.f32.mrf.mxu0
    %v959 = vadd.f32 0.0, %v958
    %v960 = vpop.f32.mrf.mxu0
    %961 = vdwg.mxu0
    %v962 = vsel %vm212, %v959, -inf
    %963 = vmax.xlane.f32.xlu0 %v962
    %v964 = vpop.xlane.xlu0 %963
    %v965 = vsub.f32 %v959, %v964
    %v966 = vmul.f32 %v965, 1.442695
    %v967 = vpow.pop %v966
    %v968 = vsel %vm212, %v967, 0.0
    %969 = vadd.xlane.f32.xlu0 %v968
    %v970 = vpop.xlane.xlu0 %969
    %v971 = vrcp.pop %v970
    %v972 = vmul.f32 %v967, %v971
    %974 = vrot.lane.b32.xlu0 %v132, 96
    %v975 = vpop.permute.xlu0 %974
    %v978 = vsel %vm212, %v972, 0
    %980 = vmatprep.subr.mxu0 0.0
    %981 = vmatpush1.msra.mxu0 0.0
    %982 = vmatprep.subr.mxu0 0.0
    %983 = vmatpush1.msra.mxu0 0.0
    %984 = vmatprep.subr.mxu0 0.0
    %985 = vmatpush1.msra.mxu0 0.0
    %986 = vmatprep.subr.mxu0 0.0
    %987 = vmatpush1.msra.mxu0 0.0
    %988 = vmatprep.subr.mxu0 0.0
    %989 = vmatpush1.msra.mxu0 0.0
    %990 = vmatprep.subr.mxu0 0.0
    %991 = vmatpush1.msra.mxu0 0.0
    %992 = vmatprep.subr.mxu0 0.0
    %993 = vmatpush1.msra.mxu0 0.0
    %994 = vmatprep.subr.mxu0 0.0
    %995 = vmatpush1.msra.mxu0 0.0
    %996 = vmatprep.subr.mxu0 0.0
    %997 = vmatpush1.msra.mxu0 0.0
    %998 = vmatprep.subr.mxu0 0.0
    %999 = vmatpush1.msra.mxu0 0.0
    %1000 = vmatprep.subr.mxu0 0.0
    %1001 = vmatpush1.msra.mxu0 0.0
    %1002 = vmatprep.subr.mxu0 0.0
    %1003 = vmatpush1.msra.mxu0 0.0
    %1004 = vmatprep.subr.mxu0 0.0
    %1005 = vmatpush1.msra.mxu0 0.0
    %1006 = vmatprep.subr.mxu0 0.0
    %1007 = vmatpush1.msra.mxu0 0.0
    %1008 = vmatprep.subr.mxu0 0.0
    %1009 = vmatpush1.msra.mxu0 0.0
    %1010 = vmatprep.subr.mxu0 0.0
    %1011 = vmatpush1.msra.mxu0 %v975
    %1012 = vmatprep.subr.mxu0 0.0
    %1013 = vmatpush2.msra.mxu0 0.0
    %1014 = vmatprep.subr.mxu0 0.0
    %1015 = vmatpush2.msra.mxu0 0.0
    %1016 = vmatprep.subr.mxu0 0.0
    %1017 = vmatpush2.msra.mxu0 0.0
    %1018 = vmatprep.subr.mxu0 0.0
    %1019 = vmatpush2.msra.mxu0 0.0
    %1020 = vmatprep.subr.mxu0 0.0
    %1021 = vmatpush2.msra.mxu0 0.0
    %1022 = vmatprep.subr.mxu0 0.0
    %1023 = vmatpush2.msra.mxu0 0.0
    %1024 = vmatprep.subr.mxu0 0.0
    %1025 = vmatpush2.msra.mxu0 0.0
    %1026 = vmatprep.subr.mxu0 0.0
    %1027 = vmatpush2.msra.mxu0 0.0
    %1028 = vmatprep.subr.mxu0 0.0
    %1029 = vmatpush2.msra.mxu0 0.0
    %1030 = vmatprep.subr.mxu0 0.0
    %1031 = vmatpush2.msra.mxu0 0.0
    %1032 = vmatprep.subr.mxu0 0.0
    %1033 = vmatpush2.msra.mxu0 0.0
    %1034 = vmatprep.subr.mxu0 0.0
    %1035 = vmatpush2.msra.mxu0 0.0
    %1036 = vmatprep.subr.mxu0 0.0
    %1037 = vmatpush2.msra.mxu0 0.0
    %1038 = vmatprep.subr.mxu0 0.0
    %1039 = vmatpush2.msra.mxu0 0.0
    %1040 = vmatprep.subr.mxu0 0.0
    %1041 = vmatpush2.msra.mxu0 0.0
    %1042 = vmatprep.subr.mxu0 0.0
    %1043 = vmatpush2.msra.mxu0 0.0
    %1044 = vmatprep.mubr.f32.mxu0 0.0
    %1045 = vmatmul.mubr.f32.gmra.mxu0 %v978
    %v1046 = vpop.f32.mrf.mxu0
    %v1047 = vadd.f32 0.0, %v1046
    %v1048 = vpop.f32.mrf.mxu0
    %1049 = vdwg.mxu0
    %v1051 = vsel %vm212, %v883, 0
    %1053 = vmatprep.subr.mxu0 0.0
    %1054 = vmatpush1.msra.mxu0 0.0
    %1055 = vmatprep.subr.mxu0 0.0
    %1056 = vmatpush1.msra.mxu0 0.0
    %1057 = vmatprep.subr.mxu0 0.0
    %1058 = vmatpush1.msra.mxu0 0.0
    %1059 = vmatprep.subr.mxu0 0.0
    %1060 = vmatpush1.msra.mxu0 0.0
    %1061 = vmatprep.subr.mxu0 0.0
    %1062 = vmatpush1.msra.mxu0 0.0
    %1063 = vmatprep.subr.mxu0 0.0
    %1064 = vmatpush1.msra.mxu0 0.0
    %1065 = vmatprep.subr.mxu0 0.0
    %1066 = vmatpush1.msra.mxu0 0.0
    %1067 = vmatprep.subr.mxu0 0.0
    %1068 = vmatpush1.msra.mxu0 0.0
    %1069 = vmatprep.subr.mxu0 0.0
    %1070 = vmatpush1.msra.mxu0 0.0
    %1071 = vmatprep.subr.mxu0 0.0
    %1072 = vmatpush1.msra.mxu0 0.0
    %1073 = vmatprep.subr.mxu0 0.0
    %1074 = vmatpush1.msra.mxu0 0.0
    %1075 = vmatprep.subr.mxu0 0.0
    %1076 = vmatpush1.msra.mxu0 0.0
    %1077 = vmatprep.subr.mxu0 0.0
    %1078 = vmatpush1.msra.mxu0 0.0
    %1079 = vmatprep.subr.mxu0 0.0
    %1080 = vmatpush1.msra.mxu0 0.0
    %1081 = vmatprep.subr.mxu0 0.0
    %1082 = vmatpush1.msra.mxu0 0.0
    %1083 = vmatprep.subr.mxu0 0.0
    %1084 = vmatpush1.msra.mxu0 %v132
    %1085 = vmatprep.subr.mxu0 0.0
    %1086 = vmatpush2.msra.mxu0 0.0
    %1087 = vmatprep.subr.mxu0 0.0
    %1088 = vmatpush2.msra.mxu0 0.0
    %1089 = vmatprep.subr.mxu0 0.0
    %1090 = vmatpush2.msra.mxu0 0.0
    %1091 = vmatprep.subr.mxu0 0.0
    %1092 = vmatpush2.msra.mxu0 0.0
    %1093 = vmatprep.subr.mxu0 0.0
    %1094 = vmatpush2.msra.mxu0 0.0
    %1095 = vmatprep.subr.mxu0 0.0
    %1096 = vmatpush2.msra.mxu0 0.0
    %1097 = vmatprep.subr.mxu0 0.0
    %1098 = vmatpush2.msra.mxu0 0.0
    %1099 = vmatprep.subr.mxu0 0.0
    %1100 = vmatpush2.msra.mxu0 0.0
    %1101 = vmatprep.subr.mxu0 0.0
    %1102 = vmatpush2.msra.mxu0 0.0
    %1103 = vmatprep.subr.mxu0 0.0
    %1104 = vmatpush2.msra.mxu0 0.0
    %1105 = vmatprep.subr.mxu0 0.0
    %1106 = vmatpush2.msra.mxu0 0.0
    %1107 = vmatprep.subr.mxu0 0.0
    %1108 = vmatpush2.msra.mxu0 0.0
    %1109 = vmatprep.subr.mxu0 0.0
    %1110 = vmatpush2.msra.mxu0 0.0
    %1111 = vmatprep.subr.mxu0 0.0
    %1112 = vmatpush2.msra.mxu0 0.0
    %1113 = vmatprep.subr.mxu0 0.0
    %1114 = vmatpush2.msra.mxu0 0.0
    %1115 = vmatprep.subr.mxu0 0.0
    %1116 = vmatpush2.msra.mxu0 0.0
    %1117 = vmatprep.mubr.f32.mxu0 0.0
    %1118 = vmatmul.mubr.f32.gmra.mxu0 %v1051
    %v1119 = vpop.f32.mrf.mxu0
    %v1120 = vadd.f32 %v1047, %v1119
    %v1121 = vpop.f32.mrf.mxu0
    %1122 = vdwg.mxu0
    %1123 = vrot.lane.b32.xlu0 %v130, 96
    %v1124 = vpop.permute.xlu0 %1123
    %1125 = vrot.lane.b32.xlu0 %v130, 32
    %v1126 = vpop.permute.xlu0 %1125
    %v1127 = vsel %vm137, %v1124, 0
    %v1129 = vsel %vm137, %v1126, 0
    %1131 = vmatprep.subr.mxu0 0.0
    %1132 = vmatpush1.xpose.msra.mxu0 0.0
    %1133 = vmatprep.subr.mxu0 0.0
    %1134 = vmatpush1.xpose.msra.mxu0 0.0
    %1135 = vmatprep.subr.mxu0 0.0
    %1136 = vmatpush1.xpose.msra.mxu0 0.0
    %1137 = vmatprep.subr.mxu0 0.0
    %1138 = vmatpush1.xpose.msra.mxu0 0.0
    %1139 = vmatprep.subr.mxu0 0.0
    %1140 = vmatpush1.xpose.msra.mxu0 0.0
    %1141 = vmatprep.subr.mxu0 0.0
    %1142 = vmatpush1.xpose.msra.mxu0 0.0
    %1143 = vmatprep.subr.mxu0 0.0
    %1144 = vmatpush1.xpose.msra.mxu0 0.0
    %1145 = vmatprep.subr.mxu0 0.0
    %1146 = vmatpush1.xpose.msra.mxu0 0.0
    %1147 = vmatprep.subr.mxu0 0.0
    %1148 = vmatpush1.xpose.msra.mxu0 0.0
    %1149 = vmatprep.subr.mxu0 0.0
    %1150 = vmatpush1.xpose.msra.mxu0 0.0
    %1151 = vmatprep.subr.mxu0 0.0
    %1152 = vmatpush1.xpose.msra.mxu0 0.0
    %1153 = vmatprep.subr.mxu0 0.0
    %1154 = vmatpush1.xpose.msra.mxu0 0.0
    %1155 = vmatprep.subr.mxu0 0.0
    %1156 = vmatpush1.xpose.msra.mxu0 0.0
    %1157 = vmatprep.subr.mxu0 0.0
    %1158 = vmatpush1.xpose.msra.mxu0 0.0
    %1159 = vmatprep.subr.mxu0 0.0
    %1160 = vmatpush1.xpose.msra.mxu0 0.0
    %1161 = vmatprep.subr.mxu0 0.0
    %1162 = vmatpush1.xpose.msra.mxu0 %v1129
    %1163 = vmatprep.subr.mxu0 0.0
    %1164 = vmatpush2.xpose.msra.mxu0 0.0
    %1165 = vmatprep.subr.mxu0 0.0
    %1166 = vmatpush2.xpose.msra.mxu0 0.0
    %1167 = vmatprep.subr.mxu0 0.0
    %1168 = vmatpush2.xpose.msra.mxu0 0.0
    %1169 = vmatprep.subr.mxu0 0.0
    %1170 = vmatpush2.xpose.msra.mxu0 0.0
    %1171 = vmatprep.subr.mxu0 0.0
    %1172 = vmatpush2.xpose.msra.mxu0 0.0
    %1173 = vmatprep.subr.mxu0 0.0
    %1174 = vmatpush2.xpose.msra.mxu0 0.0
    %1175 = vmatprep.subr.mxu0 0.0
    %1176 = vmatpush2.xpose.msra.mxu0 0.0
    %1177 = vmatprep.subr.mxu0 0.0
    %1178 = vmatpush2.xpose.msra.mxu0 0.0
    %1179 = vmatprep.subr.mxu0 0.0
    %1180 = vmatpush2.xpose.msra.mxu0 0.0
    %1181 = vmatprep.subr.mxu0 0.0
    %1182 = vmatpush2.xpose.msra.mxu0 0.0
    %1183 = vmatprep.subr.mxu0 0.0
    %1184 = vmatpush2.xpose.msra.mxu0 0.0
    %1185 = vmatprep.subr.mxu0 0.0
    %1186 = vmatpush2.xpose.msra.mxu0 0.0
    %1187 = vmatprep.subr.mxu0 0.0
    %1188 = vmatpush2.xpose.msra.mxu0 0.0
    %1189 = vmatprep.subr.mxu0 0.0
    %1190 = vmatpush2.xpose.msra.mxu0 0.0
    %1191 = vmatprep.subr.mxu0 0.0
    %1192 = vmatpush2.xpose.msra.mxu0 0.0
    %1193 = vmatprep.subr.mxu0 0.0
    %1194 = vmatpush2.xpose.msra.mxu0 0.0
    %1195 = vmatprep.mubr.f32.mxu0 0.0
    %1196 = vmatmul.mubr.f32.gmra.mxu0 %v1127
    %v1197 = vpop.f32.mrf.mxu0
    %v1198 = vadd.f32 0.0, %v1197
    %v1199 = vpop.f32.mrf.mxu0
    %1200 = vdwg.mxu0
    %v1201 = vsel %vm212, %v1198, -inf
    %1202 = vmax.xlane.f32.xlu0 %v1201
    %v1203 = vpop.xlane.xlu0 %1202
    %v1204 = vsub.f32 %v1198, %v1203
    %v1205 = vmul.f32 %v1204, 1.442695
    %v1206 = vpow.pop %v1205
    %v1207 = vsel %vm212, %v1206, 0.0
    %1208 = vadd.xlane.f32.xlu0 %v1207
    %v1209 = vpop.xlane.xlu0 %1208
    %v1210 = vrcp.pop %v1209
    %v1211 = vmul.f32 %v1206, %v1210
    %1212 = vrot.lane.b32.xlu0 %v132, 64
    %v1213 = vpop.permute.xlu0 %1212
    %v1216 = vsel %vm212, %v1211, 0
    %1218 = vmatprep.subr.mxu0 0.0
    %1219 = vmatpush1.msra.mxu0 0.0
    %1220 = vmatprep.subr.mxu0 0.0
    %1221 = vmatpush1.msra.mxu0 0.0
    %1222 = vmatprep.subr.mxu0 0.0
    %1223 = vmatpush1.msra.mxu0 0.0
    %1224 = vmatprep.subr.mxu0 0.0
    %1225 = vmatpush1.msra.mxu0 0.0
    %1226 = vmatprep.subr.mxu0 0.0
    %1227 = vmatpush1.msra.mxu0 0.0
    %1228 = vmatprep.subr.mxu0 0.0
    %1229 = vmatpush1.msra.mxu0 0.0
    %1230 = vmatprep.subr.mxu0 0.0
    %1231 = vmatpush1.msra.mxu0 0.0
    %1232 = vmatprep.subr.mxu0 0.0
    %1233 = vmatpush1.msra.mxu0 0.0
    %1234 = vmatprep.subr.mxu0 0.0
    %1235 = vmatpush1.msra.mxu0 0.0
    %1236 = vmatprep.subr.mxu0 0.0
    %1237 = vmatpush1.msra.mxu0 0.0
    %1238 = vmatprep.subr.mxu0 0.0
    %1239 = vmatpush1.msra.mxu0 0.0
    %1240 = vmatprep.subr.mxu0 0.0
    %1241 = vmatpush1.msra.mxu0 0.0
    %1242 = vmatprep.subr.mxu0 0.0
    %1243 = vmatpush1.msra.mxu0 0.0
    %1244 = vmatprep.subr.mxu0 0.0
    %1245 = vmatpush1.msra.mxu0 0.0
    %1246 = vmatprep.subr.mxu0 0.0
    %1247 = vmatpush1.msra.mxu0 0.0
    %1248 = vmatprep.subr.mxu0 0.0
    %1249 = vmatpush1.msra.mxu0 %v1213
    %1250 = vmatprep.subr.mxu0 0.0
    %1251 = vmatpush2.msra.mxu0 0.0
    %1252 = vmatprep.subr.mxu0 0.0
    %1253 = vmatpush2.msra.mxu0 0.0
    %1254 = vmatprep.subr.mxu0 0.0
    %1255 = vmatpush2.msra.mxu0 0.0
    %1256 = vmatprep.subr.mxu0 0.0
    %1257 = vmatpush2.msra.mxu0 0.0
    %1258 = vmatprep.subr.mxu0 0.0
    %1259 = vmatpush2.msra.mxu0 0.0
    %1260 = vmatprep.subr.mxu0 0.0
    %1261 = vmatpush2.msra.mxu0 0.0
    %1262 = vmatprep.subr.mxu0 0.0
    %1263 = vmatpush2.msra.mxu0 0.0
    %1264 = vmatprep.subr.mxu0 0.0
    %1265 = vmatpush2.msra.mxu0 0.0
    %1266 = vmatprep.subr.mxu0 0.0
    %1267 = vmatpush2.msra.mxu0 0.0
    %1268 = vmatprep.subr.mxu0 0.0
    %1269 = vmatpush2.msra.mxu0 0.0
    %1270 = vmatprep.subr.mxu0 0.0
    %1271 = vmatpush2.msra.mxu0 0.0
    %1272 = vmatprep.subr.mxu0 0.0
    %1273 = vmatpush2.msra.mxu0 0.0
    %1274 = vmatprep.subr.mxu0 0.0
    %1275 = vmatpush2.msra.mxu0 0.0
    %1276 = vmatprep.subr.mxu0 0.0
    %1277 = vmatpush2.msra.mxu0 0.0
    %1278 = vmatprep.subr.mxu0 0.0
    %1279 = vmatpush2.msra.mxu0 0.0
    %1280 = vmatprep.subr.mxu0 0.0
    %1281 = vmatpush2.msra.mxu0 0.0
    %1282 = vmatprep.mubr.f32.mxu0 0.0
    %1283 = vmatmul.mubr.f32.gmra.mxu0 %v1216
    %v1284 = vpop.f32.mrf.mxu0
    %v1285 = vadd.f32 0.0, %v1284
    %v1286 = vpop.f32.mrf.mxu0
    %1287 = vdwg.mxu0
    %v1288 = vadd.f32 %v1120, %v1285
    %1289 = vrot.lane.b32.xlu0 %v130, 80
    %v1290 = vpop.permute.xlu0 %1289
    %1291 = vrot.lane.b32.xlu0 %v130, 16
    %v1292 = vpop.permute.xlu0 %1291
    %v1293 = vsel %vm137, %v1290, 0
    %v1295 = vsel %vm137, %v1292, 0
    %1297 = vmatprep.subr.mxu0 0.0
    %1298 = vmatpush1.xpose.msra.mxu0 0.0
    %1299 = vmatprep.subr.mxu0 0.0
    %1300 = vmatpush1.xpose.msra.mxu0 0.0
    %1301 = vmatprep.subr.mxu0 0.0
    %1302 = vmatpush1.xpose.msra.mxu0 0.0
    %1303 = vmatprep.subr.mxu0 0.0
    %1304 = vmatpush1.xpose.msra.mxu0 0.0
    %1305 = vmatprep.subr.mxu0 0.0
    %1306 = vmatpush1.xpose.msra.mxu0 0.0
    %1307 = vmatprep.subr.mxu0 0.0
    %1308 = vmatpush1.xpose.msra.mxu0 0.0
    %1309 = vmatprep.subr.mxu0 0.0
    %1310 = vmatpush1.xpose.msra.mxu0 0.0
    %1311 = vmatprep.subr.mxu0 0.0
    %1312 = vmatpush1.xpose.msra.mxu0 0.0
    %1313 = vmatprep.subr.mxu0 0.0
    %1314 = vmatpush1.xpose.msra.mxu0 0.0
    %1315 = vmatprep.subr.mxu0 0.0
    %1316 = vmatpush1.xpose.msra.mxu0 0.0
    %1317 = vmatprep.subr.mxu0 0.0
    %1318 = vmatpush1.xpose.msra.mxu0 0.0
    %1319 = vmatprep.subr.mxu0 0.0
    %1320 = vmatpush1.xpose.msra.mxu0 0.0
    %1321 = vmatprep.subr.mxu0 0.0
    %1322 = vmatpush1.xpose.msra.mxu0 0.0
    %1323 = vmatprep.subr.mxu0 0.0
    %1324 = vmatpush1.xpose.msra.mxu0 0.0
    %1325 = vmatprep.subr.mxu0 0.0
    %1326 = vmatpush1.xpose.msra.mxu0 0.0
    %1327 = vmatprep.subr.mxu0 0.0
    %1328 = vmatpush1.xpose.msra.mxu0 %v1295
    %1329 = vmatprep.subr.mxu0 0.0
    %1330 = vmatpush2.xpose.msra.mxu0 0.0
    %1331 = vmatprep.subr.mxu0 0.0
    %1332 = vmatpush2.xpose.msra.mxu0 0.0
    %1333 = vmatprep.subr.mxu0 0.0
    %1334 = vmatpush2.xpose.msra.mxu0 0.0
    %1335 = vmatprep.subr.mxu0 0.0
    %1336 = vmatpush2.xpose.msra.mxu0 0.0
    %1337 = vmatprep.subr.mxu0 0.0
    %1338 = vmatpush2.xpose.msra.mxu0 0.0
    %1339 = vmatprep.subr.mxu0 0.0
    %1340 = vmatpush2.xpose.msra.mxu0 0.0
    %1341 = vmatprep.subr.mxu0 0.0
    %1342 = vmatpush2.xpose.msra.mxu0 0.0
    %1343 = vmatprep.subr.mxu0 0.0
    %1344 = vmatpush2.xpose.msra.mxu0 0.0
    %1345 = vmatprep.subr.mxu0 0.0
    %1346 = vmatpush2.xpose.msra.mxu0 0.0
    %1347 = vmatprep.subr.mxu0 0.0
    %1348 = vmatpush2.xpose.msra.mxu0 0.0
    %1349 = vmatprep.subr.mxu0 0.0
    %1350 = vmatpush2.xpose.msra.mxu0 0.0
    %1351 = vmatprep.subr.mxu0 0.0
    %1352 = vmatpush2.xpose.msra.mxu0 0.0
    %1353 = vmatprep.subr.mxu0 0.0
    %1354 = vmatpush2.xpose.msra.mxu0 0.0
    %1355 = vmatprep.subr.mxu0 0.0
    %1356 = vmatpush2.xpose.msra.mxu0 0.0
    %1357 = vmatprep.subr.mxu0 0.0
    %1358 = vmatpush2.xpose.msra.mxu0 0.0
    %1359 = vmatprep.subr.mxu0 0.0
    %1360 = vmatpush2.xpose.msra.mxu0 0.0
    %1361 = vmatprep.mubr.f32.mxu0 0.0
    %1362 = vmatmul.mubr.f32.gmra.mxu0 %v1293
    %v1363 = vpop.f32.mrf.mxu0
    %v1364 = vadd.f32 0.0, %v1363
    %v1365 = vpop.f32.mrf.mxu0
    %1366 = vdwg.mxu0
    %v1367 = vsel %vm212, %v1364, -inf
    %1368 = vmax.xlane.f32.xlu0 %v1367
    %v1369 = vpop.xlane.xlu0 %1368
    %v1370 = vsub.f32 %v1364, %v1369
    %v1371 = vmul.f32 %v1370, 1.442695
    %v1372 = vpow.pop %v1371
    %v1373 = vsel %vm212, %v1372, 0.0
    %1374 = vadd.xlane.f32.xlu0 %v1373
    %v1375 = vpop.xlane.xlu0 %1374
    %v1376 = vrcp.pop %v1375
    %v1377 = vmul.f32 %v1372, %v1376
    %1378 = vrot.lane.b32.xlu0 %v132, 32
    %v1379 = vpop.permute.xlu0 %1378
    %v1382 = vsel %vm212, %v1377, 0
    %1384 = vmatprep.subr.mxu0 0.0
    %1385 = vmatpush1.msra.mxu0 0.0
    %1386 = vmatprep.subr.mxu0 0.0
    %1387 = vmatpush1.msra.mxu0 0.0
    %1388 = vmatprep.subr.mxu0 0.0
    %1389 = vmatpush1.msra.mxu0 0.0
    %1390 = vmatprep.subr.mxu0 0.0
    %1391 = vmatpush1.msra.mxu0 0.0
    %1392 = vmatprep.subr.mxu0 0.0
    %1393 = vmatpush1.msra.mxu0 0.0
    %1394 = vmatprep.subr.mxu0 0.0
    %1395 = vmatpush1.msra.mxu0 0.0
    %1396 = vmatprep.subr.mxu0 0.0
    %1397 = vmatpush1.msra.mxu0 0.0
    %1398 = vmatprep.subr.mxu0 0.0
    %1399 = vmatpush1.msra.mxu0 0.0
    %1400 = vmatprep.subr.mxu0 0.0
    %1401 = vmatpush1.msra.mxu0 0.0
    %1402 = vmatprep.subr.mxu0 0.0
    %1403 = vmatpush1.msra.mxu0 0.0
    %1404 = vmatprep.subr.mxu0 0.0
    %1405 = vmatpush1.msra.mxu0 0.0
    %1406 = vmatprep.subr.mxu0 0.0
    %1407 = vmatpush1.msra.mxu0 0.0
    %1408 = vmatprep.subr.mxu0 0.0
    %1409 = vmatpush1.msra.mxu0 0.0
    %1410 = vmatprep.subr.mxu0 0.0
    %1411 = vmatpush1.msra.mxu0 0.0
    %1412 = vmatprep.subr.mxu0 0.0
    %1413 = vmatpush1.msra.mxu0 0.0
    %1414 = vmatprep.subr.mxu0 0.0
    %1415 = vmatpush1.msra.mxu0 %v1379
    %1416 = vmatprep.subr.mxu0 0.0
    %1417 = vmatpush2.msra.mxu0 0.0
    %1418 = vmatprep.subr.mxu0 0.0
    %1419 = vmatpush2.msra.mxu0 0.0
    %1420 = vmatprep.subr.mxu0 0.0
    %1421 = vmatpush2.msra.mxu0 0.0
    %1422 = vmatprep.subr.mxu0 0.0
    %1423 = vmatpush2.msra.mxu0 0.0
    %1424 = vmatprep.subr.mxu0 0.0
    %1425 = vmatpush2.msra.mxu0 0.0
    %1426 = vmatprep.subr.mxu0 0.0
    %1427 = vmatpush2.msra.mxu0 0.0
    %1428 = vmatprep.subr.mxu0 0.0
    %1429 = vmatpush2.msra.mxu0 0.0
    %1430 = vmatprep.subr.mxu0 0.0
    %1431 = vmatpush2.msra.mxu0 0.0
    %1432 = vmatprep.subr.mxu0 0.0
    %1433 = vmatpush2.msra.mxu0 0.0
    %1434 = vmatprep.subr.mxu0 0.0
    %1435 = vmatpush2.msra.mxu0 0.0
    %1436 = vmatprep.subr.mxu0 0.0
    %1437 = vmatpush2.msra.mxu0 0.0
    %1438 = vmatprep.subr.mxu0 0.0
    %1439 = vmatpush2.msra.mxu0 0.0
    %1440 = vmatprep.subr.mxu0 0.0
    %1441 = vmatpush2.msra.mxu0 0.0
    %1442 = vmatprep.subr.mxu0 0.0
    %1443 = vmatpush2.msra.mxu0 0.0
    %1444 = vmatprep.subr.mxu0 0.0
    %1445 = vmatpush2.msra.mxu0 0.0
    %1446 = vmatprep.subr.mxu0 0.0
    %1447 = vmatpush2.msra.mxu0 0.0
    %1448 = vmatprep.mubr.f32.mxu0 0.0
    %1449 = vmatmul.mubr.f32.gmra.mxu0 %v1382
    %v1450 = vpop.f32.mrf.mxu0
    %v1451 = vadd.f32 0.0, %v1450
    %v1452 = vpop.f32.mrf.mxu0
    %1453 = vdwg.mxu0
    %v1454 = vadd.f32 %v1288, %v1451
    %1455 = vst.msk [vmem:[#allocation7 + $0x8] sm:$0xff] %vm50, %v1454
    // Predicated region
    $region18: #{tpu_custom_call.1} parent=1 // pred_check
      _
    $region19: #{tpu_custom_call.1} parent=1 // pred_check_branch
      %1457 = sbr.rel (0) target = $region21
    $region20: #{tpu_custom_call.1} parent=1 // pred_region
      %s1459 = ssub.s32 256, 256
      %1460 = vsyncadd [#allocation4], %s1459
      %s1461 = sshll.u32 [#allocation7], 4
      %s1462 = int_to_ptr.vmem [resolvable:$true] %s1461
      %1467 = dma.vmem_to_hbm [thread:$0]  %s1462, 256, %s2, [#allocation4], 128, 128, 8
    $region21: #{tpu_custom_call.1} parent=1 // pred_fallthru
      _
    // Predicated region
    $region22: #{tpu_custom_call.1} parent=1 // pred_check
      _
    $region23: #{tpu_custom_call.1} parent=1 // pred_check_branch
      %1469 = sbr.rel (0) target = $region25
    $region24: #{tpu_custom_call.1} parent=1 // pred_region
      %1470 = dma.done [#allocation4], 256
    $region25: #{tpu_custom_call.1} parent=1 // pred_fallthru
      _
    %1471 = vsyncpa [#allocation3], 1
    %1472 = vsyncpa [#allocation6], 1
    %1473 = vsyncpa [#allocation4], 1

</llo_original>
